<compile_context>
chip_gen: v6e
topology: v6e:2x2x1
jax: 0.10.0
libtpu: 0.0.40
codegen_flags: <defaults>
</compile_context>

<pallas_src>
import functools

import jax
import jax.numpy as jnp
from jax import lax
from jax.experimental import pallas as pl
from jax.experimental.pallas import tpu as pltpu


def _head_kernel(x_ref, w_ref, b_ref, u_ref, out_ref, *, num_actions):
    A = num_actions
    L = out_ref.shape[1]                      # lane-dense slab width (multiple of 128)

    # Fused actor+critic projection on the MXU: lanes [1]=baseline, [2:2+A]=logits,
    # everything else is exactly 0 (zero weight columns / zero bias).
    full = jnp.dot(x_ref[...], w_ref[...],
                   preferred_element_type=jnp.float32,
                   precision=lax.Precision.HIGHEST) + b_ref[...]        # [B, L]

    col = lax.broadcasted_iota(jnp.int32, full.shape, 1)                # [B, L]
    act_mask = (col >= 2) & (col < 2 + A)

    # softmax over the action lanes, then clamp(1e-10, 1).
    NEG = jnp.float32(-1e30)
    masked_logits = jnp.where(act_mask, full, NEG)
    m = jnp.max(masked_logits, axis=-1, keepdims=True)
    e = jnp.exp(masked_logits - m)            # exactly 0 on non-action lanes
    denom = jnp.sum(e, axis=-1, keepdims=True)
    p = e * pl.reciprocal(denom, approx=True)
    p = jnp.where(act_mask, jnp.clip(p, 1e-10, 1.0), 0.0)               # [B, L]

    # torch.multinomial(p, 1, replacement=True): inverse-CDF with one uniform/row.
    # Cumulative sum along the lane axis via an upper-triangular matmul (MXU),
    # avoiding a lane-axis scan.
    row_i = lax.broadcasted_iota(jnp.int32, (L, L), 0)
    col_i = lax.broadcasted_iota(jnp.int32, (L, L), 1)
    tri = (row_i <= col_i).astype(jnp.float32)                          # [L, L]
    csum = jnp.dot(p, tri, preferred_element_type=jnp.float32,
                   precision=lax.Precision.HIGHEST)                     # [B, L]

    # Total mass taken from the cumsum itself (csum is monotone, so max == last
    # column) -> threshold and cumsum come from the same accumulation path.
    total = jnp.max(csum, axis=-1, keepdims=True)                       # [B, 1]
    thresh = u_ref[...] * total                                         # [B, 1]

    cnt = jnp.sum(jnp.where(act_mask & (csum < thresh), 1.0, 0.0),
                  axis=-1, keepdims=True)                               # [B, 1]
    action_f = jnp.minimum(cnt, jnp.float32(A - 1))                     # clamp edge case

    # Single unmasked lane-dense store: lane 0 = action (as f32), lane 1 =
    # baseline, lanes 2..2+A-1 = policy logits (already sitting in `full`).
    out_ref[...] = jnp.where(col == 0, action_f, full)


def pack_head_params(actor_w, actor_b, critic_w, critic_b):
    """Pack actor [A,256]/critic [1,256] params into a lane-dense [256,L] weight."""
    A, D = actor_w.shape
    L = -(-(A + 2) // 128) * 128            # round lanes up to a multiple of 128
    w = jnp.zeros((D, L), jnp.float32)
    w = w.at[:, 1:2].set(critic_w.T)
    w = w.at[:, 2:2 + A].set(actor_w.T)
    b = jnp.zeros((1, L), jnp.float32)
    b = b.at[0, 1].set(critic_b[0])
    b = b.at[0, 2:2 + A].set(actor_b)
    return w, b


def head_forward(x, w_pack, b_pack, sample_key, num_actions, *, debug=False):
    """x: [B, 256] f32; w_pack: [256, L]; b_pack: [1, L]; returns (action, logits, baseline)."""
    B, D = x.shape
    L = w_pack.shape[1]
    B_pad = -(-B // 8) * 8                   # pad batch to the f32 sublane multiple

    # One uniform per (padded) row for inverse-CDF multinomial sampling.
    u = jax.random.uniform(sample_key, (B_pad, 1), jnp.float32)
    x_in = x if B_pad == B else jnp.zeros((B_pad, D), x.dtype).at[:B].set(x)

    kernel = functools.partial(_head_kernel, num_actions=num_actions)
    slab = pl.pallas_call(
        kernel,
        out_shape=jax.ShapeDtypeStruct((B_pad, L), jnp.float32),
        grid=(1,),
        in_specs=[
            pl.BlockSpec((B_pad, D), lambda i: (0, 0)),
            pl.BlockSpec((D, L), lambda i: (0, 0)),
            pl.BlockSpec((1, L), lambda i: (0, 0)),
            pl.BlockSpec((B_pad, 1), lambda i: (0, 0)),
        ],
        out_specs=pl.BlockSpec((B_pad, L), lambda i: (0, 0)),
        compiler_params=pltpu.CompilerParams(
            dimension_semantics=("arbitrary",)),
    )(x_in, w_pack, b_pack, u)

    slab = slab[:B]
    new_action = slab[:, 0:1].astype(jnp.int32)
    baseline = slab[:, 1:2]
    policy_logits = slab[:, 2:2 + num_actions]

    if debug:
        # TODO(synk): the module's print(prob_weights) is a host side effect; it is
        # gated here (recomputed from logits) so the hot path never syncs to host.
        prob_weights = jnp.clip(jax.nn.softmax(policy_logits, axis=1), 1e-10, 1.0)
        print('prob_weights:')
        print(prob_weights)

    return new_action, policy_logits, baseline


if __name__ == "__main__":
    NUM_ACTIONS = 6
    B, D = 4, 256

    key = jax.random.PRNGKey(0)
    kx, kaw, kab, kcw, kcb, ksample = jax.random.split(key, 6)

    # Deterministic parameter init (shapes from nn.Linear(256, A) / nn.Linear(256, 1)).
    bound = 1.0 / jnp.sqrt(jnp.float32(D))
    actor_w = jax.random.uniform(kaw, (NUM_ACTIONS, D), jnp.float32, -bound, bound)
    actor_b = jax.random.uniform(kab, (NUM_ACTIONS,), jnp.float32, -bound, bound)
    critic_w = jax.random.uniform(kcw, (1, D), jnp.float32, -bound, bound)
    critic_b = jax.random.uniform(kcb, (1,), jnp.float32, -bound, bound)

    w_pack, b_pack = pack_head_params(actor_w, actor_b, critic_w, critic_b)
    x = jax.random.normal(kx, (B, D), jnp.float32)

    new_action, policy_logits, baseline = head_forward(
        x, w_pack, b_pack, ksample, NUM_ACTIONS, debug=False)
    jax.block_until_ready((new_action, policy_logits, baseline))

    # Reference check against the plain-JAX forward.
    ref_logits = jnp.dot(x, actor_w.T, precision=lax.Precision.HIGHEST) + actor_b
    ref_base = jnp.dot(x, critic_w.T, precision=lax.Precision.HIGHEST) + critic_b

    assert new_action.shape == (B, 1) and new_action.dtype == jnp.int32
    assert policy_logits.shape == (B, NUM_ACTIONS)
    assert baseline.shape == (B, 1)
    assert bool(jnp.all((new_action >= 0) & (new_action < NUM_ACTIONS)))
    assert bool(jnp.allclose(policy_logits, ref_logits, atol=1e-3, rtol=1e-3))
    assert bool(jnp.allclose(baseline, ref_base, atol=1e-3, rtol=1e-3))

    print("KERNEL_OK")
</pallas_src>

<mosaic_0001>
module attributes {stable_mosaic.version = 11 : i64} {
  func.func @_head_kernel(%arg0: i32, %arg1: memref<8x256xf32, #tpu.memory_space<vmem>>, %arg2: memref<256x128xf32, #tpu.memory_space<vmem>>, %arg3: memref<1x128xf32, #tpu.memory_space<vmem>>, %arg4: memref<8x1xf32, #tpu.memory_space<vmem>>, %arg5: memref<8x128xf32, #tpu.memory_space<vmem>>) attributes {dimension_semantics = [#tpu.dimension_semantics<arbitrary>], iteration_bounds = array<i64: 1>, scalar_prefetch = 0 : i64, scratch_operands = 0 : i64, tpu.core_type = #tpu.core_type<tc>, window_params = [{pipeline_mode = #tpu.pipeline_mode<synchronous>, transform_indices = @transform_0, window_bounds = array<i64: 8, 256>}, {pipeline_mode = #tpu.pipeline_mode<synchronous>, transform_indices = @transform_1, window_bounds = array<i64: 256, 128>}, {pipeline_mode = #tpu.pipeline_mode<synchronous>, transform_indices = @transform_2, window_bounds = array<i64: 1, 128>}, {pipeline_mode = #tpu.pipeline_mode<synchronous>, transform_indices = @transform_3, window_bounds = array<i64: 8, 1>}, {pipeline_mode = #tpu.pipeline_mode<synchronous>, transform_indices = @transform_4, window_bounds = array<i64: 8, 128>}]} {
    %c0 = arith.constant 0 : index
    %c0_0 = arith.constant 0 : index
    %0 = vector.load %arg1[%c0, %c0_0] : memref<8x256xf32, #tpu.memory_space<vmem>>, vector<8x256xf32>
    %c0_1 = arith.constant 0 : index
    %c0_2 = arith.constant 0 : index
    %1 = vector.load %arg2[%c0_1, %c0_2] : memref<256x128xf32, #tpu.memory_space<vmem>>, vector<256x128xf32>
    %cst = arith.constant dense<0.000000e+00> : vector<8x128xf32>
    %2 = tpu.matmul %0, %1, %cst {dimension_numbers = #tpu.dot_dimension_numbers<[1], [0], [0], [1], [0, 0, 1, 1], [], []>, precision = #tpu.contract_precision<fp32>} : vector<8x256xf32>, vector<256x128xf32>, vector<8x128xf32> -> vector<8x128xf32>
    %c0_3 = arith.constant 0 : index
    %c0_4 = arith.constant 0 : index
    %3 = vector.load %arg3[%c0_3, %c0_4] : memref<1x128xf32, #tpu.memory_space<vmem>>, vector<1x128xf32>
    %4 = vector.broadcast %3 : vector<1x128xf32> to vector<8x128xf32>
    %5 = arith.addf %2, %4 : vector<8x128xf32>
    %6 = tpu.iota {dimensions = array<i32: 1>} : vector<8x128xi32>
    %c2_i32 = arith.constant 2 : i32
    %7 = vector.broadcast %c2_i32 : i32 to vector<8x128xi32>
    %8 = arith.cmpi sge, %6, %7 : vector<8x128xi32>
    %c8_i32 = arith.constant 8 : i32
    %9 = vector.broadcast %c8_i32 : i32 to vector<8x128xi32>
    %10 = arith.cmpi slt, %6, %9 : vector<8x128xi32>
    %11 = arith.andi %8, %10 : vector<8x128xi1>
    %cst_5 = arith.constant -1.000000e+30 : f32
    %12 = vector.broadcast %cst_5 : f32 to vector<8x128xf32>
    %13 = arith.select %11, %5, %12 : vector<8x128xi1>, vector<8x128xf32>
    %cst_6 = arith.constant dense<0xFF800000> : vector<8xf32>
    %14 = vector.multi_reduction <maximumf>, %13, %cst_6 [1] : vector<8x128xf32> to vector<8xf32>
    %15 = vector.shape_cast %14 : vector<8xf32> to vector<8x1xf32>
    %16 = vector.broadcast %15 : vector<8x1xf32> to vector<8x128xf32>
    %17 = arith.subf %13, %16 : vector<8x128xf32>
    %18 = math.exp %17 : vector<8x128xf32>
    %cst_7 = arith.constant dense<0.000000e+00> : vector<8xf32>
    %19 = vector.multi_reduction <add>, %18, %cst_7 [1] : vector<8x128xf32> to vector<8xf32>
    %20 = vector.shape_cast %19 : vector<8xf32> to vector<8x1xf32>
    %21 = tpu.reciprocal %20 {approx = true} : vector<8x1xf32> -> vector<8x1xf32>
    %22 = vector.broadcast %21 : vector<8x1xf32> to vector<8x128xf32>
    %23 = arith.mulf %18, %22 : vector<8x128xf32>
    %cst_8 = arith.constant 1.000000e-10 : f32
    %cst_9 = arith.constant 1.000000e+00 : f32
    %24 = vector.broadcast %cst_8 : f32 to vector<8x128xf32>
    %25 = arith.maximumf %24, %23 : vector<8x128xf32>
    %26 = vector.broadcast %cst_9 : f32 to vector<8x128xf32>
    %27 = arith.minimumf %26, %25 : vector<8x128xf32>
    %cst_10 = arith.constant 0.000000e+00 : f32
    %28 = vector.broadcast %cst_10 : f32 to vector<8x128xf32>
    %29 = arith.select %11, %27, %28 : vector<8x128xi1>, vector<8x128xf32>
    %30 = tpu.iota {dimensions = array<i32: 0>} : vector<128x128xi32>
    %31 = tpu.iota {dimensions = array<i32: 1>} : vector<128x128xi32>
    %32 = arith.cmpi sle, %30, %31 : vector<128x128xi32>
    %33 = arith.extui %32 : vector<128x128xi1> to vector<128x128xi32>
    %34 = arith.sitofp %33 : vector<128x128xi32> to vector<128x128xf32>
    %cst_11 = arith.constant dense<0.000000e+00> : vector<8x128xf32>
    %35 = tpu.matmul %29, %34, %cst_11 {dimension_numbers = #tpu.dot_dimension_numbers<[1], [0], [0], [1], [0, 0, 1, 1], [], []>, precision = #tpu.contract_precision<fp32>} : vector<8x128xf32>, vector<128x128xf32>, vector<8x128xf32> -> vector<8x128xf32>
    %cst_12 = arith.constant dense<0xFF800000> : vector<8xf32>
    %36 = vector.multi_reduction <maximumf>, %35, %cst_12 [1] : vector<8x128xf32> to vector<8xf32>
    %37 = vector.shape_cast %36 : vector<8xf32> to vector<8x1xf32>
    %c0_13 = arith.constant 0 : index
    %c0_14 = arith.constant 0 : index
    %38 = vector.load %arg4[%c0_13, %c0_14] : memref<8x1xf32, #tpu.memory_space<vmem>>, vector<8x1xf32>
    %39 = arith.mulf %38, %37 : vector<8x1xf32>
    %40 = vector.broadcast %39 : vector<8x1xf32> to vector<8x128xf32>
    %41 = arith.cmpf olt, %35, %40 : vector<8x128xf32>
    %42 = arith.andi %11, %41 : vector<8x128xi1>
    %cst_15 = arith.constant 1.000000e+00 : f32
    %cst_16 = arith.constant 0.000000e+00 : f32
    %43 = vector.broadcast %cst_15 : f32 to vector<8x128xf32>
    %44 = vector.broadcast %cst_16 : f32 to vector<8x128xf32>
    %45 = arith.select %42, %43, %44 : vector<8x128xi1>, vector<8x128xf32>
    %cst_17 = arith.constant dense<0.000000e+00> : vector<8xf32>
    %46 = vector.multi_reduction <add>, %45, %cst_17 [1] : vector<8x128xf32> to vector<8xf32>
    %47 = vector.shape_cast %46 : vector<8xf32> to vector<8x1xf32>
    %cst_18 = arith.constant 5.000000e+00 : f32
    %48 = vector.broadcast %cst_18 : f32 to vector<8x1xf32>
    %49 = arith.minimumf %47, %48 : vector<8x1xf32>
    %c0_i32 = arith.constant 0 : i32
    %50 = vector.broadcast %c0_i32 : i32 to vector<8x128xi32>
    %51 = arith.cmpi eq, %6, %50 : vector<8x128xi32>
    %52 = vector.shape_cast %49 : vector<8x1xf32> to vector<8x1xf32>
    %53 = vector.broadcast %52 : vector<8x1xf32> to vector<8x128xf32>
    %54 = arith.select %51, %53, %5 : vector<8x128xi1>, vector<8x128xf32>
    %c0_19 = arith.constant 0 : index
    %c0_20 = arith.constant 0 : index
    %55 = vector.load %arg5[%c0_19, %c0_20] : memref<8x128xf32, #tpu.memory_space<vmem>>, vector<8x128xf32>
    tpu.vector_store %arg5[%c0_19, %c0_20], %54 {strides = array<i32>} : memref<8x128xf32, #tpu.memory_space<vmem>>, vector<8x128xf32>,
    return
  }
  func.func @transform_0(%arg0: i32) -> (i32, i32) {
    %c0_i32 = arith.constant 0 : i32
    %c0_i32_0 = arith.constant 0 : i32
    %c0_i32_1 = arith.constant 0 : i32
    return %c0_i32, %c0_i32_0 : i32, i32
  }
  func.func @transform_1(%arg0: i32) -> (i32, i32) {
    %c0_i32 = arith.constant 0 : i32
    %c0_i32_0 = arith.constant 0 : i32
    %c0_i32_1 = arith.constant 0 : i32
    return %c0_i32, %c0_i32_0 : i32, i32
  }
  func.func @transform_2(%arg0: i32) -> (i32, i32) {
    %c0_i32 = arith.constant 0 : i32
    %c0_i32_0 = arith.constant 0 : i32
    %c0_i32_1 = arith.constant 0 : i32
    return %c0_i32, %c0_i32_0 : i32, i32
  }
  func.func @transform_3(%arg0: i32) -> (i32, i32) {
    %c0_i32 = arith.constant 0 : i32
    %c0_i32_0 = arith.constant 0 : i32
    %c0_i32_1 = arith.constant 0 : i32
    return %c0_i32, %c0_i32_0 : i32, i32
  }
  func.func @transform_4(%arg0: i32) -> (i32, i32) {
    %c0_i32 = arith.constant 0 : i32
    %c0_i32_0 = arith.constant 0 : i32
    %c0_i32_1 = arith.constant 0 : i32
    return %c0_i32, %c0_i32_0 : i32, i32
  }
}

</mosaic_0001>

<llo_original>
// kernel: tpu_custom_call.1
$region0: #{tpu_custom_call.1}
  #allocation0 [shape = 'u32[]', space=smem, size = 0x4, offset = 0x4, fixed_abs, tag = 'smem constant byte address 0x4 - core index']
  #allocation1 [shape = 'u32[144,128]{1,0:T(1,128)}', space=vmem, size = 0x12000, scoped, tag = 'internal scratch']
  %s0 = inlined_call_operand.hbm [shape: f32[8,256], index: 0, kind: input, shape index: {}]
  %s1 = inlined_call_operand.hbm [shape: f32[256,128], index: 1, kind: input, shape index: {}]
  %s2 = inlined_call_operand.vmem [shape: f32[1,128], index: 2, kind: input, shape index: {}]
  %s3 = inlined_call_operand.vmem [shape: f32[8,1], index: 3, kind: input, shape index: {}]
  %s4 = inlined_call_operand.hbm [shape: f32[8,128], index: 4, kind: output, shape index: {}]
  %s5 = sld [smem:[#allocation0]]
  $region34: #{tpu_custom_call.1} parent=0
    _
  %s7 = ssub.s32 1, %s5
  %s8 = scalar_select 0, %s7, %s5
  $region1: #{tpu_custom_call.1} parent=0
    #allocation2 [shape = 'u8[8192]{0}', space=vmem, size = 0x2000, scoped, tag = 'input window, operand 0, single buffered']
    #allocation3 [shape = 's32[1]{0}', space=sflag, size = 0x4, scoped, tag = 'scoped memory for tpu_custom_call.1']
    #allocation4 [shape = 's32[1]{0}', space=sflag, size = 0x4, scoped, tag = 'scoped memory for tpu_custom_call.1']
    #allocation5 [shape = 'u8[131072]{0}', space=vmem, size = 0x20000, scoped, tag = 'input window, operand 1, single buffered']
    #allocation6 [shape = 's32[1]{0}', space=sflag, size = 0x4, scoped, tag = 'scoped memory for tpu_custom_call.1']
    #allocation7 [shape = 'u8[4096]{0}', space=vmem, size = 0x1000, scoped, tag = 'output window, operand 0, single buffered']
    %9 = vsyncpa [#allocation3], 0
    %10 = vsyncpa [#allocation6], 0
    %11 = vsyncpa [#allocation4], 0
    // Predicated region
    $region2: #{tpu_custom_call.1} parent=1 // pred_check
      _
    $region3: #{tpu_custom_call.1} parent=1 // pred_check_branch
      %13 = sbr.rel (0) target = $region5
    $region4: #{tpu_custom_call.1} parent=1 // pred_region
      %s15 = ssub.s32 256, 256
      %16 = vsyncadd [#allocation3], %s15
      %s18 = sshll.u32 [#allocation2], 4
      %s19 = int_to_ptr.vmem [resolvable:$true] %s18
      %21 = dma.hbm_to_vmem [thread:$0]  %s0, 256, %s19, [#allocation3]
    $region5: #{tpu_custom_call.1} parent=1 // pred_fallthru
      _
    // Predicated region
    $region6: #{tpu_custom_call.1} parent=1 // pred_check
      _
    $region7: #{tpu_custom_call.1} parent=1 // pred_check_branch
      %23 = sbr.rel (0) target = $region9
    $region8: #{tpu_custom_call.1} parent=1 // pred_region
      %s25 = ssub.s32 4096, 4096
      %26 = vsyncadd [#allocation6], %s25
      %s27 = sshll.u32 [#allocation5], 4
      %s28 = int_to_ptr.vmem [resolvable:$true] %s27
      %33 = dma.hbm_to_vmem [thread:$0]  %s1, 4096, %s28, [#allocation6], 128, 128, 8
    $region9: #{tpu_custom_call.1} parent=1 // pred_fallthru
      _
    // Predicated region
    $region10: #{tpu_custom_call.1} parent=1 // pred_check
      _
    $region11: #{tpu_custom_call.1} parent=1 // pred_check_branch
      %35 = sbr.rel (0) target = $region13
    $region12: #{tpu_custom_call.1} parent=1 // pred_region
      _
    $region13: #{tpu_custom_call.1} parent=1 // pred_fallthru
      _
    // Predicated region
    $region14: #{tpu_custom_call.1} parent=1 // pred_check
      _
    $region15: #{tpu_custom_call.1} parent=1 // pred_check_branch
      %37 = sbr.rel (0) target = $region17
    $region16: #{tpu_custom_call.1} parent=1 // pred_region
      _
    $region17: #{tpu_custom_call.1} parent=1 // pred_fallthru
      _
    // Predicated region
    $region18: #{tpu_custom_call.1} parent=1 // pred_check
      _
    $region19: #{tpu_custom_call.1} parent=1 // pred_check_branch
      %39 = sbr.rel (0) target = $region21
    $region20: #{tpu_custom_call.1} parent=1 // pred_region
      %40 = dma.done [#allocation3], 256
    $region21: #{tpu_custom_call.1} parent=1 // pred_fallthru
      _
    // Predicated region
    $region22: #{tpu_custom_call.1} parent=1 // pred_check
      _
    $region23: #{tpu_custom_call.1} parent=1 // pred_check_branch
      %42 = sbr.rel (0) target = $region25
    $region24: #{tpu_custom_call.1} parent=1 // pred_region
      %43 = dma.done [#allocation6], 4096
    $region25: #{tpu_custom_call.1} parent=1 // pred_fallthru
      _
    %v44 = vld [vmem:[#allocation2] sm:$0xff]
    %v45 = vld [vmem:[#allocation2 + $0x8] sm:$0xff]
    %v46 = vld [vmem:[#allocation5] sm:$0xff]
    %v47 = vld [vmem:[#allocation5 + $0x8] sm:$0xff]
    %v48 = vld [vmem:[#allocation5 + $0x10] sm:$0xff]
    %v49 = vld [vmem:[#allocation5 + $0x18] sm:$0xff]
    %v50 = vld [vmem:[#allocation5 + $0x20] sm:$0xff]
    %v51 = vld [vmem:[#allocation5 + $0x28] sm:$0xff]
    %v52 = vld [vmem:[#allocation5 + $0x30] sm:$0xff]
    %v53 = vld [vmem:[#allocation5 + $0x38] sm:$0xff]
    %v54 = vld [vmem:[#allocation5 + $0x40] sm:$0xff]
    %v55 = vld [vmem:[#allocation5 + $0x48] sm:$0xff]
    %v56 = vld [vmem:[#allocation5 + $0x50] sm:$0xff]
    %v57 = vld [vmem:[#allocation5 + $0x58] sm:$0xff]
    %v58 = vld [vmem:[#allocation5 + $0x60] sm:$0xff]
    %v59 = vld [vmem:[#allocation5 + $0x68] sm:$0xff]
    %v60 = vld [vmem:[#allocation5 + $0x70] sm:$0xff]
    %v61 = vld [vmem:[#allocation5 + $0x78] sm:$0xff]
    %v62 = vld [vmem:[#allocation5 + $0x80] sm:$0xff]
    %v63 = vld [vmem:[#allocation5 + $0x88] sm:$0xff]
    %v64 = vld [vmem:[#allocation5 + $0x90] sm:$0xff]
    %v65 = vld [vmem:[#allocation5 + $0x98] sm:$0xff]
    %v66 = vld [vmem:[#allocation5 + $0xa0] sm:$0xff]
    %v67 = vld [vmem:[#allocation5 + $0xa8] sm:$0xff]
    %v68 = vld [vmem:[#allocation5 + $0xb0] sm:$0xff]
    %v69 = vld [vmem:[#allocation5 + $0xb8] sm:$0xff]
    %v70 = vld [vmem:[#allocation5 + $0xc0] sm:$0xff]
    %v71 = vld [vmem:[#allocation5 + $0xc8] sm:$0xff]
    %v72 = vld [vmem:[#allocation5 + $0xd0] sm:$0xff]
    %v73 = vld [vmem:[#allocation5 + $0xd8] sm:$0xff]
    %v74 = vld [vmem:[#allocation5 + $0xe0] sm:$0xff]
    %v75 = vld [vmem:[#allocation5 + $0xe8] sm:$0xff]
    %v76 = vld [vmem:[#allocation5 + $0xf0] sm:$0xff]
    %v77 = vld [vmem:[#allocation5 + $0xf8] sm:$0xff]
    %v78 = vld [vmem:[%s2] sm:$0x1]
    %v80 = vlaneseq
    %v81 = vshrl.u32 %v80, 7
    %v82 = vsub.s32 0, %v81
    %v83 = vrot.slane %v78, %v82
    %85 = vmatprep.subr.mxu0 0.0
    %v86 = vand.u32 %v61, 4294901760
    %87 = vmatpush1.msra.mxu0 %v86
    %88 = vmatprep.subr.mxu0 0.0
    %v89 = vand.u32 %v60, 4294901760
    %90 = vmatpush1.msra.mxu0 %v89
    %91 = vmatprep.subr.mxu0 0.0
    %v92 = vand.u32 %v59, 4294901760
    %93 = vmatpush1.msra.mxu0 %v92
    %94 = vmatprep.subr.mxu0 0.0
    %v95 = vand.u32 %v58, 4294901760
    %96 = vmatpush1.msra.mxu0 %v95
    %97 = vmatprep.subr.mxu0 0.0
    %v98 = vand.u32 %v57, 4294901760
    %99 = vmatpush1.msra.mxu0 %v98
    %100 = vmatprep.subr.mxu0 0.0
    %v101 = vand.u32 %v56, 4294901760
    %102 = vmatpush1.msra.mxu0 %v101
    %103 = vmatprep.subr.mxu0 0.0
    %v104 = vand.u32 %v55, 4294901760
    %105 = vmatpush1.msra.mxu0 %v104
    %106 = vmatprep.subr.mxu0 0.0
    %v107 = vand.u32 %v54, 4294901760
    %108 = vmatpush1.msra.mxu0 %v107
    %109 = vmatprep.subr.mxu0 0.0
    %v110 = vand.u32 %v53, 4294901760
    %111 = vmatpush1.msra.mxu0 %v110
    %112 = vmatprep.subr.mxu0 0.0
    %v113 = vand.u32 %v52, 4294901760
    %114 = vmatpush1.msra.mxu0 %v113
    %115 = vmatprep.subr.mxu0 0.0
    %v116 = vand.u32 %v51, 4294901760
    %117 = vmatpush1.msra.mxu0 %v116
    %118 = vmatprep.subr.mxu0 0.0
    %v119 = vand.u32 %v50, 4294901760
    %120 = vmatpush1.msra.mxu0 %v119
    %121 = vmatprep.subr.mxu0 0.0
    %v122 = vand.u32 %v49, 4294901760
    %123 = vmatpush1.msra.mxu0 %v122
    %124 = vmatprep.subr.mxu0 0.0
    %v125 = vand.u32 %v48, 4294901760
    %126 = vmatpush1.msra.mxu0 %v125
    %127 = vmatprep.subr.mxu0 0.0
    %v128 = vand.u32 %v47, 4294901760
    %129 = vmatpush1.msra.mxu0 %v128
    %130 = vmatprep.subr.mxu0 0.0
    %v131 = vand.u32 %v46, 4294901760
    %132 = vmatpush1.msra.mxu0 %v131
    %133 = vmatprep.subr.mxu0 0.0
    %v134 = vand.u32 %v77, 4294901760
    %135 = vmatpush2.msra.mxu0 %v134
    %136 = vmatprep.subr.mxu0 0.0
    %v137 = vand.u32 %v76, 4294901760
    %138 = vmatpush2.msra.mxu0 %v137
    %139 = vmatprep.subr.mxu0 0.0
    %v140 = vand.u32 %v75, 4294901760
    %141 = vmatpush2.msra.mxu0 %v140
    %142 = vmatprep.subr.mxu0 0.0
    %v143 = vand.u32 %v74, 4294901760
    %144 = vmatpush2.msra.mxu0 %v143
    %145 = vmatprep.subr.mxu0 0.0
    %v146 = vand.u32 %v73, 4294901760
    %147 = vmatpush2.msra.mxu0 %v146
    %148 = vmatprep.subr.mxu0 0.0
    %v149 = vand.u32 %v72, 4294901760
    %150 = vmatpush2.msra.mxu0 %v149
    %151 = vmatprep.subr.mxu0 0.0
    %v152 = vand.u32 %v71, 4294901760
    %153 = vmatpush2.msra.mxu0 %v152
    %154 = vmatprep.subr.mxu0 0.0
    %v155 = vand.u32 %v70, 4294901760
    %156 = vmatpush2.msra.mxu0 %v155
    %157 = vmatprep.subr.mxu0 0.0
    %v158 = vand.u32 %v69, 4294901760
    %159 = vmatpush2.msra.mxu0 %v158
    %160 = vmatprep.subr.mxu0 0.0
    %v161 = vand.u32 %v68, 4294901760
    %162 = vmatpush2.msra.mxu0 %v161
    %163 = vmatprep.subr.mxu0 0.0
    %v164 = vand.u32 %v67, 4294901760
    %165 = vmatpush2.msra.mxu0 %v164
    %166 = vmatprep.subr.mxu0 0.0
    %v167 = vand.u32 %v66, 4294901760
    %168 = vmatpush2.msra.mxu0 %v167
    %169 = vmatprep.subr.mxu0 0.0
    %v170 = vand.u32 %v65, 4294901760
    %171 = vmatpush2.msra.mxu0 %v170
    %172 = vmatprep.subr.mxu0 0.0
    %v173 = vand.u32 %v64, 4294901760
    %174 = vmatpush2.msra.mxu0 %v173
    %175 = vmatprep.subr.mxu0 0.0
    %v176 = vand.u32 %v63, 4294901760
    %177 = vmatpush2.msra.mxu0 %v176
    %178 = vmatprep.subr.mxu0 0.0
    %v179 = vand.u32 %v62, 4294901760
    %180 = vmatpush2.msra.mxu0 %v179
    %v181 = vand.u32 %v45, 4294901760
    %v182 = vsub.f32 %v45, %v181
    %v183 = vand.u32 %v182, 4294901760
    %v184 = vsub.f32 %v182, %v183
    %v185 = vand.u32 %v184, 4294901760
    %186 = vmatprep.mubr.f32.mxu0 %v185
    %v187 = vand.u32 %v44, 4294901760
    %v188 = vsub.f32 %v44, %v187
    %v189 = vand.u32 %v188, 4294901760
    %v190 = vsub.f32 %v188, %v189
    %v191 = vand.u32 %v190, 4294901760
    %192 = vmatmul.mubr.f32.gmra.mxu0 %v191
    %v193 = vpop.f32.mrf.mxu0
    %v194 = vadd.f32 %v83, %v193
    %v195 = vpop.f32.mrf.mxu0
    %196 = vdwg.mxu0
    %197 = vmatprep.subr.mxu0 0.0
    %v198 = vand.u32 %v61, 4294901760
    %v199 = vsub.f32 %v61, %v198
    %v200 = vand.u32 %v199, 4294901760
    %v201 = vsub.f32 %v199, %v200
    %v202 = vand.u32 %v201, 4294901760
    %203 = vmatpush1.msra.mxu0 %v202
    %204 = vmatprep.subr.mxu0 0.0
    %v205 = vand.u32 %v60, 4294901760
    %v206 = vsub.f32 %v60, %v205
    %v207 = vand.u32 %v206, 4294901760
    %v208 = vsub.f32 %v206, %v207
    %v209 = vand.u32 %v208, 4294901760
    %210 = vmatpush1.msra.mxu0 %v209
    %211 = vmatprep.subr.mxu0 0.0
    %v212 = vand.u32 %v59, 4294901760
    %v213 = vsub.f32 %v59, %v212
    %v214 = vand.u32 %v213, 4294901760
    %v215 = vsub.f32 %v213, %v214
    %v216 = vand.u32 %v215, 4294901760
    %217 = vmatpush1.msra.mxu0 %v216
    %218 = vmatprep.subr.mxu0 0.0
    %v219 = vand.u32 %v58, 4294901760
    %v220 = vsub.f32 %v58, %v219
    %v221 = vand.u32 %v220, 4294901760
    %v222 = vsub.f32 %v220, %v221
    %v223 = vand.u32 %v222, 4294901760
    %224 = vmatpush1.msra.mxu0 %v223
    %225 = vmatprep.subr.mxu0 0.0
    %v226 = vand.u32 %v57, 4294901760
    %v227 = vsub.f32 %v57, %v226
    %v228 = vand.u32 %v227, 4294901760
    %v229 = vsub.f32 %v227, %v228
    %v230 = vand.u32 %v229, 4294901760
    %231 = vmatpush1.msra.mxu0 %v230
    %232 = vmatprep.subr.mxu0 0.0
    %v233 = vand.u32 %v56, 4294901760
    %v234 = vsub.f32 %v56, %v233
    %v235 = vand.u32 %v234, 4294901760
    %v236 = vsub.f32 %v234, %v235
    %v237 = vand.u32 %v236, 4294901760
    %238 = vmatpush1.msra.mxu0 %v237
    %239 = vmatprep.subr.mxu0 0.0
    %v240 = vand.u32 %v55, 4294901760
    %v241 = vsub.f32 %v55, %v240
    %v242 = vand.u32 %v241, 4294901760
    %v243 = vsub.f32 %v241, %v242
    %v244 = vand.u32 %v243, 4294901760
    %245 = vmatpush1.msra.mxu0 %v244
    %246 = vmatprep.subr.mxu0 0.0
    %v247 = vand.u32 %v54, 4294901760
    %v248 = vsub.f32 %v54, %v247
    %v249 = vand.u32 %v248, 4294901760
    %v250 = vsub.f32 %v248, %v249
    %v251 = vand.u32 %v250, 4294901760
    %252 = vmatpush1.msra.mxu0 %v251
    %253 = vmatprep.subr.mxu0 0.0
    %v254 = vand.u32 %v53, 4294901760
    %v255 = vsub.f32 %v53, %v254
    %v256 = vand.u32 %v255, 4294901760
    %v257 = vsub.f32 %v255, %v256
    %v258 = vand.u32 %v257, 4294901760
    %259 = vmatpush1.msra.mxu0 %v258
    %260 = vmatprep.subr.mxu0 0.0
    %v261 = vand.u32 %v52, 4294901760
    %v262 = vsub.f32 %v52, %v261
    %v263 = vand.u32 %v262, 4294901760
    %v264 = vsub.f32 %v262, %v263
    %v265 = vand.u32 %v264, 4294901760
    %266 = vmatpush1.msra.mxu0 %v265
    %267 = vmatprep.subr.mxu0 0.0
    %v268 = vand.u32 %v51, 4294901760
    %v269 = vsub.f32 %v51, %v268
    %v270 = vand.u32 %v269, 4294901760
    %v271 = vsub.f32 %v269, %v270
    %v272 = vand.u32 %v271, 4294901760
    %273 = vmatpush1.msra.mxu0 %v272
    %274 = vmatprep.subr.mxu0 0.0
    %v275 = vand.u32 %v50, 4294901760
    %v276 = vsub.f32 %v50, %v275
    %v277 = vand.u32 %v276, 4294901760
    %v278 = vsub.f32 %v276, %v277
    %v279 = vand.u32 %v278, 4294901760
    %280 = vmatpush1.msra.mxu0 %v279
    %281 = vmatprep.subr.mxu0 0.0
    %v282 = vand.u32 %v49, 4294901760
    %v283 = vsub.f32 %v49, %v282
    %v284 = vand.u32 %v283, 4294901760
    %v285 = vsub.f32 %v283, %v284
    %v286 = vand.u32 %v285, 4294901760
    %287 = vmatpush1.msra.mxu0 %v286
    %288 = vmatprep.subr.mxu0 0.0
    %v289 = vand.u32 %v48, 4294901760
    %v290 = vsub.f32 %v48, %v289
    %v291 = vand.u32 %v290, 4294901760
    %v292 = vsub.f32 %v290, %v291
    %v293 = vand.u32 %v292, 4294901760
    %294 = vmatpush1.msra.mxu0 %v293
    %295 = vmatprep.subr.mxu0 0.0
    %v296 = vand.u32 %v47, 4294901760
    %v297 = vsub.f32 %v47, %v296
    %v298 = vand.u32 %v297, 4294901760
    %v299 = vsub.f32 %v297, %v298
    %v300 = vand.u32 %v299, 4294901760
    %301 = vmatpush1.msra.mxu0 %v300
    %302 = vmatprep.subr.mxu0 0.0
    %v303 = vand.u32 %v46, 4294901760
    %v304 = vsub.f32 %v46, %v303
    %v305 = vand.u32 %v304, 4294901760
    %v306 = vsub.f32 %v304, %v305
    %v307 = vand.u32 %v306, 4294901760
    %308 = vmatpush1.msra.mxu0 %v307
    %309 = vmatprep.subr.mxu0 0.0
    %v310 = vand.u32 %v77, 4294901760
    %v311 = vsub.f32 %v77, %v310
    %v312 = vand.u32 %v311, 4294901760
    %v313 = vsub.f32 %v311, %v312
    %v314 = vand.u32 %v313, 4294901760
    %315 = vmatpush2.msra.mxu0 %v314
    %316 = vmatprep.subr.mxu0 0.0
    %v317 = vand.u32 %v76, 4294901760
    %v318 = vsub.f32 %v76, %v317
    %v319 = vand.u32 %v318, 4294901760
    %v320 = vsub.f32 %v318, %v319
    %v321 = vand.u32 %v320, 4294901760
    %322 = vmatpush2.msra.mxu0 %v321
    %323 = vmatprep.subr.mxu0 0.0
    %v324 = vand.u32 %v75, 4294901760
    %v325 = vsub.f32 %v75, %v324
    %v326 = vand.u32 %v325, 4294901760
    %v327 = vsub.f32 %v325, %v326
    %v328 = vand.u32 %v327, 4294901760
    %329 = vmatpush2.msra.mxu0 %v328
    %330 = vmatprep.subr.mxu0 0.0
    %v331 = vand.u32 %v74, 4294901760
    %v332 = vsub.f32 %v74, %v331
    %v333 = vand.u32 %v332, 4294901760
    %v334 = vsub.f32 %v332, %v333
    %v335 = vand.u32 %v334, 4294901760
    %336 = vmatpush2.msra.mxu0 %v335
    %337 = vmatprep.subr.mxu0 0.0
    %v338 = vand.u32 %v73, 4294901760
    %v339 = vsub.f32 %v73, %v338
    %v340 = vand.u32 %v339, 4294901760
    %v341 = vsub.f32 %v339, %v340
    %v342 = vand.u32 %v341, 4294901760
    %343 = vmatpush2.msra.mxu0 %v342
    %344 = vmatprep.subr.mxu0 0.0
    %v345 = vand.u32 %v72, 4294901760
    %v346 = vsub.f32 %v72, %v345
    %v347 = vand.u32 %v346, 4294901760
    %v348 = vsub.f32 %v346, %v347
    %v349 = vand.u32 %v348, 4294901760
    %350 = vmatpush2.msra.mxu0 %v349
    %351 = vmatprep.subr.mxu0 0.0
    %v352 = vand.u32 %v71, 4294901760
    %v353 = vsub.f32 %v71, %v352
    %v354 = vand.u32 %v353, 4294901760
    %v355 = vsub.f32 %v353, %v354
    %v356 = vand.u32 %v355, 4294901760
    %357 = vmatpush2.msra.mxu0 %v356
    %358 = vmatprep.subr.mxu0 0.0
    %v359 = vand.u32 %v70, 4294901760
    %v360 = vsub.f32 %v70, %v359
    %v361 = vand.u32 %v360, 4294901760
    %v362 = vsub.f32 %v360, %v361
    %v363 = vand.u32 %v362, 4294901760
    %364 = vmatpush2.msra.mxu0 %v363
    %365 = vmatprep.subr.mxu0 0.0
    %v366 = vand.u32 %v69, 4294901760
    %v367 = vsub.f32 %v69, %v366
    %v368 = vand.u32 %v367, 4294901760
    %v369 = vsub.f32 %v367, %v368
    %v370 = vand.u32 %v369, 4294901760
    %371 = vmatpush2.msra.mxu0 %v370
    %372 = vmatprep.subr.mxu0 0.0
    %v373 = vand.u32 %v68, 4294901760
    %v374 = vsub.f32 %v68, %v373
    %v375 = vand.u32 %v374, 4294901760
    %v376 = vsub.f32 %v374, %v375
    %v377 = vand.u32 %v376, 4294901760
    %378 = vmatpush2.msra.mxu0 %v377
    %379 = vmatprep.subr.mxu0 0.0
    %v380 = vand.u32 %v67, 4294901760
    %v381 = vsub.f32 %v67, %v380
    %v382 = vand.u32 %v381, 4294901760
    %v383 = vsub.f32 %v381, %v382
    %v384 = vand.u32 %v383, 4294901760
    %385 = vmatpush2.msra.mxu0 %v384
    %386 = vmatprep.subr.mxu0 0.0
    %v387 = vand.u32 %v66, 4294901760
    %v388 = vsub.f32 %v66, %v387
    %v389 = vand.u32 %v388, 4294901760
    %v390 = vsub.f32 %v388, %v389
    %v391 = vand.u32 %v390, 4294901760
    %392 = vmatpush2.msra.mxu0 %v391
    %393 = vmatprep.subr.mxu0 0.0
    %v394 = vand.u32 %v65, 4294901760
    %v395 = vsub.f32 %v65, %v394
    %v396 = vand.u32 %v395, 4294901760
    %v397 = vsub.f32 %v395, %v396
    %v398 = vand.u32 %v397, 4294901760
    %399 = vmatpush2.msra.mxu0 %v398
    %400 = vmatprep.subr.mxu0 0.0
    %v401 = vand.u32 %v64, 4294901760
    %v402 = vsub.f32 %v64, %v401
    %v403 = vand.u32 %v402, 4294901760
    %v404 = vsub.f32 %v402, %v403
    %v405 = vand.u32 %v404, 4294901760
    %406 = vmatpush2.msra.mxu0 %v405
    %407 = vmatprep.subr.mxu0 0.0
    %v408 = vand.u32 %v63, 4294901760
    %v409 = vsub.f32 %v63, %v408
    %v410 = vand.u32 %v409, 4294901760
    %v411 = vsub.f32 %v409, %v410
    %v412 = vand.u32 %v411, 4294901760
    %413 = vmatpush2.msra.mxu0 %v412
    %414 = vmatprep.subr.mxu0 0.0
    %v415 = vand.u32 %v62, 4294901760
    %v416 = vsub.f32 %v62, %v415
    %v417 = vand.u32 %v416, 4294901760
    %v418 = vsub.f32 %v416, %v417
    %v419 = vand.u32 %v418, 4294901760
    %420 = vmatpush2.msra.mxu0 %v419
    %v421 = vand.u32 %v45, 4294901760
    %422 = vmatprep.mubr.f32.mxu0 %v421
    %v423 = vand.u32 %v44, 4294901760
    %424 = vmatmul.mubr.f32.gmra.mxu0 %v423
    %v425 = vpop.f32.mrf.mxu0
    %v426 = vadd.f32 %v194, %v425
    %v427 = vpop.f32.mrf.mxu0
    %428 = vdwg.mxu0
    %429 = vmatprep.subr.mxu0 0.0
    %v430 = vand.u32 %v61, 4294901760
    %v431 = vsub.f32 %v61, %v430
    %432 = vmatpush1.msra.mxu0 %v431
    %433 = vmatprep.subr.mxu0 0.0
    %v434 = vand.u32 %v60, 4294901760
    %v435 = vsub.f32 %v60, %v434
    %436 = vmatpush1.msra.mxu0 %v435
    %437 = vmatprep.subr.mxu0 0.0
    %v438 = vand.u32 %v59, 4294901760
    %v439 = vsub.f32 %v59, %v438
    %440 = vmatpush1.msra.mxu0 %v439
    %441 = vmatprep.subr.mxu0 0.0
    %v442 = vand.u32 %v58, 4294901760
    %v443 = vsub.f32 %v58, %v442
    %444 = vmatpush1.msra.mxu0 %v443
    %445 = vmatprep.subr.mxu0 0.0
    %v446 = vand.u32 %v57, 4294901760
    %v447 = vsub.f32 %v57, %v446
    %448 = vmatpush1.msra.mxu0 %v447
    %449 = vmatprep.subr.mxu0 0.0
    %v450 = vand.u32 %v56, 4294901760
    %v451 = vsub.f32 %v56, %v450
    %452 = vmatpush1.msra.mxu0 %v451
    %453 = vmatprep.subr.mxu0 0.0
    %v454 = vand.u32 %v55, 4294901760
    %v455 = vsub.f32 %v55, %v454
    %456 = vmatpush1.msra.mxu0 %v455
    %457 = vmatprep.subr.mxu0 0.0
    %v458 = vand.u32 %v54, 4294901760
    %v459 = vsub.f32 %v54, %v458
    %460 = vmatpush1.msra.mxu0 %v459
    %461 = vmatprep.subr.mxu0 0.0
    %v462 = vand.u32 %v53, 4294901760
    %v463 = vsub.f32 %v53, %v462
    %464 = vmatpush1.msra.mxu0 %v463
    %465 = vmatprep.subr.mxu0 0.0
    %v466 = vand.u32 %v52, 4294901760
    %v467 = vsub.f32 %v52, %v466
    %468 = vmatpush1.msra.mxu0 %v467
    %469 = vmatprep.subr.mxu0 0.0
    %v470 = vand.u32 %v51, 4294901760
    %v471 = vsub.f32 %v51, %v470
    %472 = vmatpush1.msra.mxu0 %v471
    %473 = vmatprep.subr.mxu0 0.0
    %v474 = vand.u32 %v50, 4294901760
    %v475 = vsub.f32 %v50, %v474
    %476 = vmatpush1.msra.mxu0 %v475
    %477 = vmatprep.subr.mxu0 0.0
    %v478 = vand.u32 %v49, 4294901760
    %v479 = vsub.f32 %v49, %v478
    %480 = vmatpush1.msra.mxu0 %v479
    %481 = vmatprep.subr.mxu0 0.0
    %v482 = vand.u32 %v48, 4294901760
    %v483 = vsub.f32 %v48, %v482
    %484 = vmatpush1.msra.mxu0 %v483
    %485 = vmatprep.subr.mxu0 0.0
    %v486 = vand.u32 %v47, 4294901760
    %v487 = vsub.f32 %v47, %v486
    %488 = vmatpush1.msra.mxu0 %v487
    %489 = vmatprep.subr.mxu0 0.0
    %v490 = vand.u32 %v46, 4294901760
    %v491 = vsub.f32 %v46, %v490
    %492 = vmatpush1.msra.mxu0 %v491
    %493 = vmatprep.subr.mxu0 0.0
    %v494 = vand.u32 %v77, 4294901760
    %v495 = vsub.f32 %v77, %v494
    %496 = vmatpush2.msra.mxu0 %v495
    %497 = vmatprep.subr.mxu0 0.0
    %v498 = vand.u32 %v76, 4294901760
    %v499 = vsub.f32 %v76, %v498
    %500 = vmatpush2.msra.mxu0 %v499
    %501 = vmatprep.subr.mxu0 0.0
    %v502 = vand.u32 %v75, 4294901760
    %v503 = vsub.f32 %v75, %v502
    %504 = vmatpush2.msra.mxu0 %v503
    %505 = vmatprep.subr.mxu0 0.0
    %v506 = vand.u32 %v74, 4294901760
    %v507 = vsub.f32 %v74, %v506
    %508 = vmatpush2.msra.mxu0 %v507
    %509 = vmatprep.subr.mxu0 0.0
    %v510 = vand.u32 %v73, 4294901760
    %v511 = vsub.f32 %v73, %v510
    %512 = vmatpush2.msra.mxu0 %v511
    %513 = vmatprep.subr.mxu0 0.0
    %v514 = vand.u32 %v72, 4294901760
    %v515 = vsub.f32 %v72, %v514
    %516 = vmatpush2.msra.mxu0 %v515
    %517 = vmatprep.subr.mxu0 0.0
    %v518 = vand.u32 %v71, 4294901760
    %v519 = vsub.f32 %v71, %v518
    %520 = vmatpush2.msra.mxu0 %v519
    %521 = vmatprep.subr.mxu0 0.0
    %v522 = vand.u32 %v70, 4294901760
    %v523 = vsub.f32 %v70, %v522
    %524 = vmatpush2.msra.mxu0 %v523
    %525 = vmatprep.subr.mxu0 0.0
    %v526 = vand.u32 %v69, 4294901760
    %v527 = vsub.f32 %v69, %v526
    %528 = vmatpush2.msra.mxu0 %v527
    %529 = vmatprep.subr.mxu0 0.0
    %v530 = vand.u32 %v68, 4294901760
    %v531 = vsub.f32 %v68, %v530
    %532 = vmatpush2.msra.mxu0 %v531
    %533 = vmatprep.subr.mxu0 0.0
    %v534 = vand.u32 %v67, 4294901760
    %v535 = vsub.f32 %v67, %v534
    %536 = vmatpush2.msra.mxu0 %v535
    %537 = vmatprep.subr.mxu0 0.0
    %v538 = vand.u32 %v66, 4294901760
    %v539 = vsub.f32 %v66, %v538
    %540 = vmatpush2.msra.mxu0 %v539
    %541 = vmatprep.subr.mxu0 0.0
    %v542 = vand.u32 %v65, 4294901760
    %v543 = vsub.f32 %v65, %v542
    %544 = vmatpush2.msra.mxu0 %v543
    %545 = vmatprep.subr.mxu0 0.0
    %v546 = vand.u32 %v64, 4294901760
    %v547 = vsub.f32 %v64, %v546
    %548 = vmatpush2.msra.mxu0 %v547
    %549 = vmatprep.subr.mxu0 0.0
    %v550 = vand.u32 %v63, 4294901760
    %v551 = vsub.f32 %v63, %v550
    %552 = vmatpush2.msra.mxu0 %v551
    %553 = vmatprep.subr.mxu0 0.0
    %v554 = vand.u32 %v62, 4294901760
    %v555 = vsub.f32 %v62, %v554
    %556 = vmatpush2.msra.mxu0 %v555
    %v557 = vand.u32 %v45, 4294901760
    %v558 = vsub.f32 %v45, %v557
    %559 = vmatprep.mubr.f32.mxu0 %v558
    %v560 = vand.u32 %v44, 4294901760
    %v561 = vsub.f32 %v44, %v560
    %562 = vmatmul.mubr.f32.gmra.mxu0 %v561
    %v563 = vpop.f32.mrf.mxu0
    %v564 = vadd.f32 %v426, %v563
    %v565 = vpop.f32.mrf.mxu0
    %566 = vdwg.mxu0
    %567 = vmatprep.subr.mxu0 0.0
    %v568 = vand.u32 %v61, 4294901760
    %569 = vmatpush1.msra.mxu0 %v568
    %570 = vmatprep.subr.mxu0 0.0
    %v571 = vand.u32 %v60, 4294901760
    %572 = vmatpush1.msra.mxu0 %v571
    %573 = vmatprep.subr.mxu0 0.0
    %v574 = vand.u32 %v59, 4294901760
    %575 = vmatpush1.msra.mxu0 %v574
    %576 = vmatprep.subr.mxu0 0.0
    %v577 = vand.u32 %v58, 4294901760
    %578 = vmatpush1.msra.mxu0 %v577
    %579 = vmatprep.subr.mxu0 0.0
    %v580 = vand.u32 %v57, 4294901760
    %581 = vmatpush1.msra.mxu0 %v580
    %582 = vmatprep.subr.mxu0 0.0
    %v583 = vand.u32 %v56, 4294901760
    %584 = vmatpush1.msra.mxu0 %v583
    %585 = vmatprep.subr.mxu0 0.0
    %v586 = vand.u32 %v55, 4294901760
    %587 = vmatpush1.msra.mxu0 %v586
    %588 = vmatprep.subr.mxu0 0.0
    %v589 = vand.u32 %v54, 4294901760
    %590 = vmatpush1.msra.mxu0 %v589
    %591 = vmatprep.subr.mxu0 0.0
    %v592 = vand.u32 %v53, 4294901760
    %593 = vmatpush1.msra.mxu0 %v592
    %594 = vmatprep.subr.mxu0 0.0
    %v595 = vand.u32 %v52, 4294901760
    %596 = vmatpush1.msra.mxu0 %v595
    %597 = vmatprep.subr.mxu0 0.0
    %v598 = vand.u32 %v51, 4294901760
    %599 = vmatpush1.msra.mxu0 %v598
    %600 = vmatprep.subr.mxu0 0.0
    %v601 = vand.u32 %v50, 4294901760
    %602 = vmatpush1.msra.mxu0 %v601
    %603 = vmatprep.subr.mxu0 0.0
    %v604 = vand.u32 %v49, 4294901760
    %605 = vmatpush1.msra.mxu0 %v604
    %606 = vmatprep.subr.mxu0 0.0
    %v607 = vand.u32 %v48, 4294901760
    %608 = vmatpush1.msra.mxu0 %v607
    %609 = vmatprep.subr.mxu0 0.0
    %v610 = vand.u32 %v47, 4294901760
    %611 = vmatpush1.msra.mxu0 %v610
    %612 = vmatprep.subr.mxu0 0.0
    %v613 = vand.u32 %v46, 4294901760
    %614 = vmatpush1.msra.mxu0 %v613
    %615 = vmatprep.subr.mxu0 0.0
    %v616 = vand.u32 %v77, 4294901760
    %617 = vmatpush2.msra.mxu0 %v616
    %618 = vmatprep.subr.mxu0 0.0
    %v619 = vand.u32 %v76, 4294901760
    %620 = vmatpush2.msra.mxu0 %v619
    %621 = vmatprep.subr.mxu0 0.0
    %v622 = vand.u32 %v75, 4294901760
    %623 = vmatpush2.msra.mxu0 %v622
    %624 = vmatprep.subr.mxu0 0.0
    %v625 = vand.u32 %v74, 4294901760
    %626 = vmatpush2.msra.mxu0 %v625
    %627 = vmatprep.subr.mxu0 0.0
    %v628 = vand.u32 %v73, 4294901760
    %629 = vmatpush2.msra.mxu0 %v628
    %630 = vmatprep.subr.mxu0 0.0
    %v631 = vand.u32 %v72, 4294901760
    %632 = vmatpush2.msra.mxu0 %v631
    %633 = vmatprep.subr.mxu0 0.0
    %v634 = vand.u32 %v71, 4294901760
    %635 = vmatpush2.msra.mxu0 %v634
    %636 = vmatprep.subr.mxu0 0.0
    %v637 = vand.u32 %v70, 4294901760
    %638 = vmatpush2.msra.mxu0 %v637
    %639 = vmatprep.subr.mxu0 0.0
    %v640 = vand.u32 %v69, 4294901760
    %641 = vmatpush2.msra.mxu0 %v640
    %642 = vmatprep.subr.mxu0 0.0
    %v643 = vand.u32 %v68, 4294901760
    %644 = vmatpush2.msra.mxu0 %v643
    %645 = vmatprep.subr.mxu0 0.0
    %v646 = vand.u32 %v67, 4294901760
    %647 = vmatpush2.msra.mxu0 %v646
    %648 = vmatprep.subr.mxu0 0.0
    %v649 = vand.u32 %v66, 4294901760
    %650 = vmatpush2.msra.mxu0 %v649
    %651 = vmatprep.subr.mxu0 0.0
    %v652 = vand.u32 %v65, 4294901760
    %653 = vmatpush2.msra.mxu0 %v652
    %654 = vmatprep.subr.mxu0 0.0
    %v655 = vand.u32 %v64, 4294901760
    %656 = vmatpush2.msra.mxu0 %v655
    %657 = vmatprep.subr.mxu0 0.0
    %v658 = vand.u32 %v63, 4294901760
    %659 = vmatpush2.msra.mxu0 %v658
    %660 = vmatprep.subr.mxu0 0.0
    %v661 = vand.u32 %v62, 4294901760
    %662 = vmatpush2.msra.mxu0 %v661
    %v663 = vand.u32 %v45, 4294901760
    %v664 = vsub.f32 %v45, %v663
    %v665 = vand.u32 %v664, 4294901760
    %666 = vmatprep.mubr.f32.mxu0 %v665
    %v667 = vand.u32 %v44, 4294901760
    %v668 = vsub.f32 %v44, %v667
    %v669 = vand.u32 %v668, 4294901760
    %670 = vmatmul.mubr.f32.gmra.mxu0 %v669
    %v671 = vpop.f32.mrf.mxu0
    %v672 = vadd.f32 %v564, %v671
    %v673 = vpop.f32.mrf.mxu0
    %674 = vdwg.mxu0
    %675 = vmatprep.subr.mxu0 0.0
    %v676 = vand.u32 %v61, 4294901760
    %v677 = vsub.f32 %v61, %v676
    %v678 = vand.u32 %v677, 4294901760
    %679 = vmatpush1.msra.mxu0 %v678
    %680 = vmatprep.subr.mxu0 0.0
    %v681 = vand.u32 %v60, 4294901760
    %v682 = vsub.f32 %v60, %v681
    %v683 = vand.u32 %v682, 4294901760
    %684 = vmatpush1.msra.mxu0 %v683
    %685 = vmatprep.subr.mxu0 0.0
    %v686 = vand.u32 %v59, 4294901760
    %v687 = vsub.f32 %v59, %v686
    %v688 = vand.u32 %v687, 4294901760
    %689 = vmatpush1.msra.mxu0 %v688
    %690 = vmatprep.subr.mxu0 0.0
    %v691 = vand.u32 %v58, 4294901760
    %v692 = vsub.f32 %v58, %v691
    %v693 = vand.u32 %v692, 4294901760
    %694 = vmatpush1.msra.mxu0 %v693
    %695 = vmatprep.subr.mxu0 0.0
    %v696 = vand.u32 %v57, 4294901760
    %v697 = vsub.f32 %v57, %v696
    %v698 = vand.u32 %v697, 4294901760
    %699 = vmatpush1.msra.mxu0 %v698
    %700 = vmatprep.subr.mxu0 0.0
    %v701 = vand.u32 %v56, 4294901760
    %v702 = vsub.f32 %v56, %v701
    %v703 = vand.u32 %v702, 4294901760
    %704 = vmatpush1.msra.mxu0 %v703
    %705 = vmatprep.subr.mxu0 0.0
    %v706 = vand.u32 %v55, 4294901760
    %v707 = vsub.f32 %v55, %v706
    %v708 = vand.u32 %v707, 4294901760
    %709 = vmatpush1.msra.mxu0 %v708
    %710 = vmatprep.subr.mxu0 0.0
    %v711 = vand.u32 %v54, 4294901760
    %v712 = vsub.f32 %v54, %v711
    %v713 = vand.u32 %v712, 4294901760
    %714 = vmatpush1.msra.mxu0 %v713
    %715 = vmatprep.subr.mxu0 0.0
    %v716 = vand.u32 %v53, 4294901760
    %v717 = vsub.f32 %v53, %v716
    %v718 = vand.u32 %v717, 4294901760
    %719 = vmatpush1.msra.mxu0 %v718
    %720 = vmatprep.subr.mxu0 0.0
    %v721 = vand.u32 %v52, 4294901760
    %v722 = vsub.f32 %v52, %v721
    %v723 = vand.u32 %v722, 4294901760
    %724 = vmatpush1.msra.mxu0 %v723
    %725 = vmatprep.subr.mxu0 0.0
    %v726 = vand.u32 %v51, 4294901760
    %v727 = vsub.f32 %v51, %v726
    %v728 = vand.u32 %v727, 4294901760
    %729 = vmatpush1.msra.mxu0 %v728
    %730 = vmatprep.subr.mxu0 0.0
    %v731 = vand.u32 %v50, 4294901760
    %v732 = vsub.f32 %v50, %v731
    %v733 = vand.u32 %v732, 4294901760
    %734 = vmatpush1.msra.mxu0 %v733
    %735 = vmatprep.subr.mxu0 0.0
    %v736 = vand.u32 %v49, 4294901760
    %v737 = vsub.f32 %v49, %v736
    %v738 = vand.u32 %v737, 4294901760
    %739 = vmatpush1.msra.mxu0 %v738
    %740 = vmatprep.subr.mxu0 0.0
    %v741 = vand.u32 %v48, 4294901760
    %v742 = vsub.f32 %v48, %v741
    %v743 = vand.u32 %v742, 4294901760
    %744 = vmatpush1.msra.mxu0 %v743
    %745 = vmatprep.subr.mxu0 0.0
    %v746 = vand.u32 %v47, 4294901760
    %v747 = vsub.f32 %v47, %v746
    %v748 = vand.u32 %v747, 4294901760
    %749 = vmatpush1.msra.mxu0 %v748
    %750 = vmatprep.subr.mxu0 0.0
    %v751 = vand.u32 %v46, 4294901760
    %v752 = vsub.f32 %v46, %v751
    %v753 = vand.u32 %v752, 4294901760
    %754 = vmatpush1.msra.mxu0 %v753
    %755 = vmatprep.subr.mxu0 0.0
    %v756 = vand.u32 %v77, 4294901760
    %v757 = vsub.f32 %v77, %v756
    %v758 = vand.u32 %v757, 4294901760
    %759 = vmatpush2.msra.mxu0 %v758
    %760 = vmatprep.subr.mxu0 0.0
    %v761 = vand.u32 %v76, 4294901760
    %v762 = vsub.f32 %v76, %v761
    %v763 = vand.u32 %v762, 4294901760
    %764 = vmatpush2.msra.mxu0 %v763
    %765 = vmatprep.subr.mxu0 0.0
    %v766 = vand.u32 %v75, 4294901760
    %v767 = vsub.f32 %v75, %v766
    %v768 = vand.u32 %v767, 4294901760
    %769 = vmatpush2.msra.mxu0 %v768
    %770 = vmatprep.subr.mxu0 0.0
    %v771 = vand.u32 %v74, 4294901760
    %v772 = vsub.f32 %v74, %v771
    %v773 = vand.u32 %v772, 4294901760
    %774 = vmatpush2.msra.mxu0 %v773
    %775 = vmatprep.subr.mxu0 0.0
    %v776 = vand.u32 %v73, 4294901760
    %v777 = vsub.f32 %v73, %v776
    %v778 = vand.u32 %v777, 4294901760
    %779 = vmatpush2.msra.mxu0 %v778
    %780 = vmatprep.subr.mxu0 0.0
    %v781 = vand.u32 %v72, 4294901760
    %v782 = vsub.f32 %v72, %v781
    %v783 = vand.u32 %v782, 4294901760
    %784 = vmatpush2.msra.mxu0 %v783
    %785 = vmatprep.subr.mxu0 0.0
    %v786 = vand.u32 %v71, 4294901760
    %v787 = vsub.f32 %v71, %v786
    %v788 = vand.u32 %v787, 4294901760
    %789 = vmatpush2.msra.mxu0 %v788
    %790 = vmatprep.subr.mxu0 0.0
    %v791 = vand.u32 %v70, 4294901760
    %v792 = vsub.f32 %v70, %v791
    %v793 = vand.u32 %v792, 4294901760
    %794 = vmatpush2.msra.mxu0 %v793
    %795 = vmatprep.subr.mxu0 0.0
    %v796 = vand.u32 %v69, 4294901760
    %v797 = vsub.f32 %v69, %v796
    %v798 = vand.u32 %v797, 4294901760
    %799 = vmatpush2.msra.mxu0 %v798
    %800 = vmatprep.subr.mxu0 0.0
    %v801 = vand.u32 %v68, 4294901760
    %v802 = vsub.f32 %v68, %v801
    %v803 = vand.u32 %v802, 4294901760
    %804 = vmatpush2.msra.mxu0 %v803
    %805 = vmatprep.subr.mxu0 0.0
    %v806 = vand.u32 %v67, 4294901760
    %v807 = vsub.f32 %v67, %v806
    %v808 = vand.u32 %v807, 4294901760
    %809 = vmatpush2.msra.mxu0 %v808
    %810 = vmatprep.subr.mxu0 0.0
    %v811 = vand.u32 %v66, 4294901760
    %v812 = vsub.f32 %v66, %v811
    %v813 = vand.u32 %v812, 4294901760
    %814 = vmatpush2.msra.mxu0 %v813
    %815 = vmatprep.subr.mxu0 0.0
    %v816 = vand.u32 %v65, 4294901760
    %v817 = vsub.f32 %v65, %v816
    %v818 = vand.u32 %v817, 4294901760
    %819 = vmatpush2.msra.mxu0 %v818
    %820 = vmatprep.subr.mxu0 0.0
    %v821 = vand.u32 %v64, 4294901760
    %v822 = vsub.f32 %v64, %v821
    %v823 = vand.u32 %v822, 4294901760
    %824 = vmatpush2.msra.mxu0 %v823
    %825 = vmatprep.subr.mxu0 0.0
    %v826 = vand.u32 %v63, 4294901760
    %v827 = vsub.f32 %v63, %v826
    %v828 = vand.u32 %v827, 4294901760
    %829 = vmatpush2.msra.mxu0 %v828
    %830 = vmatprep.subr.mxu0 0.0
    %v831 = vand.u32 %v62, 4294901760
    %v832 = vsub.f32 %v62, %v831
    %v833 = vand.u32 %v832, 4294901760
    %834 = vmatpush2.msra.mxu0 %v833
    %v835 = vand.u32 %v45, 4294901760
    %836 = vmatprep.mubr.f32.mxu0 %v835
    %v837 = vand.u32 %v44, 4294901760
    %838 = vmatmul.mubr.f32.gmra.mxu0 %v837
    %v839 = vpop.f32.mrf.mxu0
    %v840 = vadd.f32 %v672, %v839
    %v841 = vpop.f32.mrf.mxu0
    %842 = vdwg.mxu0
    %843 = vmatprep.subr.mxu0 0.0
    %v844 = vand.u32 %v61, 4294901760
    %845 = vmatpush1.msra.mxu0 %v844
    %846 = vmatprep.subr.mxu0 0.0
    %v847 = vand.u32 %v60, 4294901760
    %848 = vmatpush1.msra.mxu0 %v847
    %849 = vmatprep.subr.mxu0 0.0
    %v850 = vand.u32 %v59, 4294901760
    %851 = vmatpush1.msra.mxu0 %v850
    %852 = vmatprep.subr.mxu0 0.0
    %v853 = vand.u32 %v58, 4294901760
    %854 = vmatpush1.msra.mxu0 %v853
    %855 = vmatprep.subr.mxu0 0.0
    %v856 = vand.u32 %v57, 4294901760
    %857 = vmatpush1.msra.mxu0 %v856
    %858 = vmatprep.subr.mxu0 0.0
    %v859 = vand.u32 %v56, 4294901760
    %860 = vmatpush1.msra.mxu0 %v859
    %861 = vmatprep.subr.mxu0 0.0
    %v862 = vand.u32 %v55, 4294901760
    %863 = vmatpush1.msra.mxu0 %v862
    %864 = vmatprep.subr.mxu0 0.0
    %v865 = vand.u32 %v54, 4294901760
    %866 = vmatpush1.msra.mxu0 %v865
    %867 = vmatprep.subr.mxu0 0.0
    %v868 = vand.u32 %v53, 4294901760
    %869 = vmatpush1.msra.mxu0 %v868
    %870 = vmatprep.subr.mxu0 0.0
    %v871 = vand.u32 %v52, 4294901760
    %872 = vmatpush1.msra.mxu0 %v871
    %873 = vmatprep.subr.mxu0 0.0
    %v874 = vand.u32 %v51, 4294901760
    %875 = vmatpush1.msra.mxu0 %v874
    %876 = vmatprep.subr.mxu0 0.0
    %v877 = vand.u32 %v50, 4294901760
    %878 = vmatpush1.msra.mxu0 %v877
    %879 = vmatprep.subr.mxu0 0.0
    %v880 = vand.u32 %v49, 4294901760
    %881 = vmatpush1.msra.mxu0 %v880
    %882 = vmatprep.subr.mxu0 0.0
    %v883 = vand.u32 %v48, 4294901760
    %884 = vmatpush1.msra.mxu0 %v883
    %885 = vmatprep.subr.mxu0 0.0
    %v886 = vand.u32 %v47, 4294901760
    %887 = vmatpush1.msra.mxu0 %v886
    %888 = vmatprep.subr.mxu0 0.0
    %v889 = vand.u32 %v46, 4294901760
    %890 = vmatpush1.msra.mxu0 %v889
    %891 = vmatprep.subr.mxu0 0.0
    %v892 = vand.u32 %v77, 4294901760
    %893 = vmatpush2.msra.mxu0 %v892
    %894 = vmatprep.subr.mxu0 0.0
    %v895 = vand.u32 %v76, 4294901760
    %896 = vmatpush2.msra.mxu0 %v895
    %897 = vmatprep.subr.mxu0 0.0
    %v898 = vand.u32 %v75, 4294901760
    %899 = vmatpush2.msra.mxu0 %v898
    %900 = vmatprep.subr.mxu0 0.0
    %v901 = vand.u32 %v74, 4294901760
    %902 = vmatpush2.msra.mxu0 %v901
    %903 = vmatprep.subr.mxu0 0.0
    %v904 = vand.u32 %v73, 4294901760
    %905 = vmatpush2.msra.mxu0 %v904
    %906 = vmatprep.subr.mxu0 0.0
    %v907 = vand.u32 %v72, 4294901760
    %908 = vmatpush2.msra.mxu0 %v907
    %909 = vmatprep.subr.mxu0 0.0
    %v910 = vand.u32 %v71, 4294901760
    %911 = vmatpush2.msra.mxu0 %v910
    %912 = vmatprep.subr.mxu0 0.0
    %v913 = vand.u32 %v70, 4294901760
    %914 = vmatpush2.msra.mxu0 %v913
    %915 = vmatprep.subr.mxu0 0.0
    %v916 = vand.u32 %v69, 4294901760
    %917 = vmatpush2.msra.mxu0 %v916
    %918 = vmatprep.subr.mxu0 0.0
    %v919 = vand.u32 %v68, 4294901760
    %920 = vmatpush2.msra.mxu0 %v919
    %921 = vmatprep.subr.mxu0 0.0
    %v922 = vand.u32 %v67, 4294901760
    %923 = vmatpush2.msra.mxu0 %v922
    %924 = vmatprep.subr.mxu0 0.0
    %v925 = vand.u32 %v66, 4294901760
    %926 = vmatpush2.msra.mxu0 %v925
    %927 = vmatprep.subr.mxu0 0.0
    %v928 = vand.u32 %v65, 4294901760
    %929 = vmatpush2.msra.mxu0 %v928
    %930 = vmatprep.subr.mxu0 0.0
    %v931 = vand.u32 %v64, 4294901760
    %932 = vmatpush2.msra.mxu0 %v931
    %933 = vmatprep.subr.mxu0 0.0
    %v934 = vand.u32 %v63, 4294901760
    %935 = vmatpush2.msra.mxu0 %v934
    %936 = vmatprep.subr.mxu0 0.0
    %v937 = vand.u32 %v62, 4294901760
    %938 = vmatpush2.msra.mxu0 %v937
    %v939 = vand.u32 %v45, 4294901760
    %940 = vmatprep.mubr.f32.mxu0 %v939
    %v941 = vand.u32 %v44, 4294901760
    %942 = vmatmul.mubr.f32.gmra.mxu0 %v941
    %v943 = vpop.f32.mrf.mxu0
    %v944 = vadd.f32 %v840, %v943
    %v945 = vpop.f32.mrf.mxu0
    %946 = vdwg.mxu0
    %v947 = vlaneseq
    %v948 = vand.u32 %v947, 127
    %vm949 = vcmp.ge.s32.totalorder %v948, 2
    %vm950 = vcmp.lt.s32.totalorder %v948, 8
    %vm951 = vmand %vm949, %vm950
    %v952 = vsel %vm951, %v944, -1e+30
    %953 = vmax.xlane.f32.xlu0 %v952
    %v954 = vpop.xlane.xlu0 %953
    %v955 = vsub.f32 %v952, %v954
    %v956 = vmul.f32 %v955, 1.442695
    %v957 = vpow.pop %v956
    %958 = vadd.xlane.f32.xlu0 %v957
    %v959 = vpop.xlane.xlu0 %958
    %v960 = vrcp.pop %v959
    %v961 = vmul.f32 %v957, %v960
    %v962 = vmax.f32 %v961, 1e-10
    %v963 = vmin.f32 %v962, 1.0
    %v964 = vsel %vm951, %v963, 0.0
    %v965 = vlaneseq
    %v966 = vshrl.u32 %v965, 7
    %v967 = vadd.s32 %v966, 8
    %v968 = vadd.s32 %v966, 16
    %v969 = vadd.s32 %v966, 24
    %v970 = vadd.s32 %v966, 32
    %v971 = vadd.s32 %v966, 40
    %v972 = vadd.s32 %v966, 48
    %v973 = vadd.s32 %v966, 56
    %v974 = vadd.s32 %v966, 64
    %v975 = vadd.s32 %v966, 72
    %v976 = vadd.s32 %v966, 80
    %v977 = vadd.s32 %v966, 88
    %v978 = vadd.s32 %v966, 96
    %v979 = vadd.s32 %v966, 104
    %v980 = vadd.s32 %v966, 112
    %v981 = vadd.s32 %v966, 120
    %vm982 = vcmp.le.s32.totalorder %v966, %v948
    %vm983 = vcmp.le.s32.totalorder %v967, %v948
    %vm984 = vcmp.le.s32.totalorder %v968, %v948
    %vm985 = vcmp.le.s32.totalorder %v969, %v948
    %vm986 = vcmp.le.s32.totalorder %v970, %v948
    %vm987 = vcmp.le.s32.totalorder %v971, %v948
    %vm988 = vcmp.le.s32.totalorder %v972, %v948
    %vm989 = vcmp.le.s32.totalorder %v973, %v948
    %vm990 = vcmp.le.s32.totalorder %v974, %v948
    %vm991 = vcmp.le.s32.totalorder %v975, %v948
    %vm992 = vcmp.le.s32.totalorder %v976, %v948
    %vm993 = vcmp.le.s32.totalorder %v977, %v948
    %vm994 = vcmp.le.s32.totalorder %v978, %v948
    %vm995 = vcmp.le.s32.totalorder %v979, %v948
    %vm996 = vcmp.le.s32.totalorder %v980, %v948
    %vm997 = vcmp.le.s32.totalorder %v981, %v948
    %v998 = vsel %vm982, 1, 0
    %v999 = vsel %vm983, 1, 0
    %v1000 = vsel %vm984, 1, 0
    %v1001 = vsel %vm985, 1, 0
    %v1002 = vsel %vm986, 1, 0
    %v1003 = vsel %vm987, 1, 0
    %v1004 = vsel %vm988, 1, 0
    %v1005 = vsel %vm989, 1, 0
    %v1006 = vsel %vm990, 1, 0
    %v1007 = vsel %vm991, 1, 0
    %v1008 = vsel %vm992, 1, 0
    %v1009 = vsel %vm993, 1, 0
    %v1010 = vsel %vm994, 1, 0
    %v1011 = vsel %vm995, 1, 0
    %v1012 = vsel %vm996, 1, 0
    %v1013 = vsel %vm997, 1, 0
    %v1014 = vcvt.s32.f32 %v998
    %v1015 = vcvt.s32.f32 %v999
    %v1016 = vcvt.s32.f32 %v1000
    %v1017 = vcvt.s32.f32 %v1001
    %v1018 = vcvt.s32.f32 %v1002
    %v1019 = vcvt.s32.f32 %v1003
    %v1020 = vcvt.s32.f32 %v1004
    %v1021 = vcvt.s32.f32 %v1005
    %v1022 = vcvt.s32.f32 %v1006
    %v1023 = vcvt.s32.f32 %v1007
    %v1024 = vcvt.s32.f32 %v1008
    %v1025 = vcvt.s32.f32 %v1009
    %v1026 = vcvt.s32.f32 %v1010
    %v1027 = vcvt.s32.f32 %v1011
    %v1028 = vcvt.s32.f32 %v1012
    %v1029 = vcvt.s32.f32 %v1013
    %1030 = vmatprep.subr.mxu0 0.0
    %v1031 = vand.u32 %v1029, 4294901760
    %1032 = vmatpush1.msra.mxu0 %v1031
    %1033 = vmatprep.subr.mxu0 0.0
    %v1034 = vand.u32 %v1028, 4294901760
    %1035 = vmatpush1.msra.mxu0 %v1034
    %1036 = vmatprep.subr.mxu0 0.0
    %v1037 = vand.u32 %v1027, 4294901760
    %1038 = vmatpush1.msra.mxu0 %v1037
    %1039 = vmatprep.subr.mxu0 0.0
    %v1040 = vand.u32 %v1026, 4294901760
    %1041 = vmatpush1.msra.mxu0 %v1040
    %1042 = vmatprep.subr.mxu0 0.0
    %v1043 = vand.u32 %v1025, 4294901760
    %1044 = vmatpush1.msra.mxu0 %v1043
    %1045 = vmatprep.subr.mxu0 0.0
    %v1046 = vand.u32 %v1024, 4294901760
    %1047 = vmatpush1.msra.mxu0 %v1046
    %1048 = vmatprep.subr.mxu0 0.0
    %v1049 = vand.u32 %v1023, 4294901760
    %1050 = vmatpush1.msra.mxu0 %v1049
    %1051 = vmatprep.subr.mxu0 0.0
    %v1052 = vand.u32 %v1022, 4294901760
    %1053 = vmatpush1.msra.mxu0 %v1052
    %1054 = vmatprep.subr.mxu0 0.0
    %v1055 = vand.u32 %v1021, 4294901760
    %1056 = vmatpush1.msra.mxu0 %v1055
    %1057 = vmatprep.subr.mxu0 0.0
    %v1058 = vand.u32 %v1020, 4294901760
    %1059 = vmatpush1.msra.mxu0 %v1058
    %1060 = vmatprep.subr.mxu0 0.0
    %v1061 = vand.u32 %v1019, 4294901760
    %1062 = vmatpush1.msra.mxu0 %v1061
    %1063 = vmatprep.subr.mxu0 0.0
    %v1064 = vand.u32 %v1018, 4294901760
    %1065 = vmatpush1.msra.mxu0 %v1064
    %1066 = vmatprep.subr.mxu0 0.0
    %v1067 = vand.u32 %v1017, 4294901760
    %1068 = vmatpush1.msra.mxu0 %v1067
    %1069 = vmatprep.subr.mxu0 0.0
    %v1070 = vand.u32 %v1016, 4294901760
    %1071 = vmatpush1.msra.mxu0 %v1070
    %1072 = vmatprep.subr.mxu0 0.0
    %v1073 = vand.u32 %v1015, 4294901760
    %1074 = vmatpush1.msra.mxu0 %v1073
    %1075 = vmatprep.subr.mxu0 0.0
    %v1076 = vand.u32 %v1014, 4294901760
    %1077 = vmatpush1.msra.mxu0 %v1076
    %1078 = vmatprep.subr.mxu0 0.0
    %1079 = vmatpush2.msra.mxu0 0.0
    %1080 = vmatprep.subr.mxu0 0.0
    %1081 = vmatpush2.msra.mxu0 0.0
    %1082 = vmatprep.subr.mxu0 0.0
    %1083 = vmatpush2.msra.mxu0 0.0
    %1084 = vmatprep.subr.mxu0 0.0
    %1085 = vmatpush2.msra.mxu0 0.0
    %1086 = vmatprep.subr.mxu0 0.0
    %1087 = vmatpush2.msra.mxu0 0.0
    %1088 = vmatprep.subr.mxu0 0.0
    %1089 = vmatpush2.msra.mxu0 0.0
    %1090 = vmatprep.subr.mxu0 0.0
    %1091 = vmatpush2.msra.mxu0 0.0
    %1092 = vmatprep.subr.mxu0 0.0
    %1093 = vmatpush2.msra.mxu0 0.0
    %1094 = vmatprep.subr.mxu0 0.0
    %1095 = vmatpush2.msra.mxu0 0.0
    %1096 = vmatprep.subr.mxu0 0.0
    %1097 = vmatpush2.msra.mxu0 0.0
    %1098 = vmatprep.subr.mxu0 0.0
    %1099 = vmatpush2.msra.mxu0 0.0
    %1100 = vmatprep.subr.mxu0 0.0
    %1101 = vmatpush2.msra.mxu0 0.0
    %1102 = vmatprep.subr.mxu0 0.0
    %1103 = vmatpush2.msra.mxu0 0.0
    %1104 = vmatprep.subr.mxu0 0.0
    %1105 = vmatpush2.msra.mxu0 0.0
    %1106 = vmatprep.subr.mxu0 0.0
    %1107 = vmatpush2.msra.mxu0 0.0
    %1108 = vmatprep.subr.mxu0 0.0
    %1109 = vmatpush2.msra.mxu0 0.0
    %1110 = vmatprep.mubr.f32.mxu0 0.0
    %v1111 = vand.u32 %v964, 4294901760
    %v1112 = vsub.f32 %v964, %v1111
    %v1113 = vand.u32 %v1112, 4294901760
    %v1114 = vsub.f32 %v1112, %v1113
    %v1115 = vand.u32 %v1114, 4294901760
    %1116 = vmatmul.mubr.f32.gmra.mxu0 %v1115
    %v1117 = vpop.f32.mrf.mxu0
    %v1118 = vadd.f32 0.0, %v1117
    %v1119 = vpop.f32.mrf.mxu0
    %1120 = vdwg.mxu0
    %1121 = vmatprep.subr.mxu0 0.0
    %v1122 = vand.u32 %v1029, 4294901760
    %v1123 = vsub.f32 %v1029, %v1122
    %v1124 = vand.u32 %v1123, 4294901760
    %v1125 = vsub.f32 %v1123, %v1124
    %v1126 = vand.u32 %v1125, 4294901760
    %1127 = vmatpush1.msra.mxu0 %v1126
    %1128 = vmatprep.subr.mxu0 0.0
    %v1129 = vand.u32 %v1028, 4294901760
    %v1130 = vsub.f32 %v1028, %v1129
    %v1131 = vand.u32 %v1130, 4294901760
    %v1132 = vsub.f32 %v1130, %v1131
    %v1133 = vand.u32 %v1132, 4294901760
    %1134 = vmatpush1.msra.mxu0 %v1133
    %1135 = vmatprep.subr.mxu0 0.0
    %v1136 = vand.u32 %v1027, 4294901760
    %v1137 = vsub.f32 %v1027, %v1136
    %v1138 = vand.u32 %v1137, 4294901760
    %v1139 = vsub.f32 %v1137, %v1138
    %v1140 = vand.u32 %v1139, 4294901760
    %1141 = vmatpush1.msra.mxu0 %v1140
    %1142 = vmatprep.subr.mxu0 0.0
    %v1143 = vand.u32 %v1026, 4294901760
    %v1144 = vsub.f32 %v1026, %v1143
    %v1145 = vand.u32 %v1144, 4294901760
    %v1146 = vsub.f32 %v1144, %v1145
    %v1147 = vand.u32 %v1146, 4294901760
    %1148 = vmatpush1.msra.mxu0 %v1147
    %1149 = vmatprep.subr.mxu0 0.0
    %v1150 = vand.u32 %v1025, 4294901760
    %v1151 = vsub.f32 %v1025, %v1150
    %v1152 = vand.u32 %v1151, 4294901760
    %v1153 = vsub.f32 %v1151, %v1152
    %v1154 = vand.u32 %v1153, 4294901760
    %1155 = vmatpush1.msra.mxu0 %v1154
    %1156 = vmatprep.subr.mxu0 0.0
    %v1157 = vand.u32 %v1024, 4294901760
    %v1158 = vsub.f32 %v1024, %v1157
    %v1159 = vand.u32 %v1158, 4294901760
    %v1160 = vsub.f32 %v1158, %v1159
    %v1161 = vand.u32 %v1160, 4294901760
    %1162 = vmatpush1.msra.mxu0 %v1161
    %1163 = vmatprep.subr.mxu0 0.0
    %v1164 = vand.u32 %v1023, 4294901760
    %v1165 = vsub.f32 %v1023, %v1164
    %v1166 = vand.u32 %v1165, 4294901760
    %v1167 = vsub.f32 %v1165, %v1166
    %v1168 = vand.u32 %v1167, 4294901760
    %1169 = vmatpush1.msra.mxu0 %v1168
    %1170 = vmatprep.subr.mxu0 0.0
    %v1171 = vand.u32 %v1022, 4294901760
    %v1172 = vsub.f32 %v1022, %v1171
    %v1173 = vand.u32 %v1172, 4294901760
    %v1174 = vsub.f32 %v1172, %v1173
    %v1175 = vand.u32 %v1174, 4294901760
    %1176 = vmatpush1.msra.mxu0 %v1175
    %1177 = vmatprep.subr.mxu0 0.0
    %v1178 = vand.u32 %v1021, 4294901760
    %v1179 = vsub.f32 %v1021, %v1178
    %v1180 = vand.u32 %v1179, 4294901760
    %v1181 = vsub.f32 %v1179, %v1180
    %v1182 = vand.u32 %v1181, 4294901760
    %1183 = vmatpush1.msra.mxu0 %v1182
    %1184 = vmatprep.subr.mxu0 0.0
    %v1185 = vand.u32 %v1020, 4294901760
    %v1186 = vsub.f32 %v1020, %v1185
    %v1187 = vand.u32 %v1186, 4294901760
    %v1188 = vsub.f32 %v1186, %v1187
    %v1189 = vand.u32 %v1188, 4294901760
    %1190 = vmatpush1.msra.mxu0 %v1189
    %1191 = vmatprep.subr.mxu0 0.0
    %v1192 = vand.u32 %v1019, 4294901760
    %v1193 = vsub.f32 %v1019, %v1192
    %v1194 = vand.u32 %v1193, 4294901760
    %v1195 = vsub.f32 %v1193, %v1194
    %v1196 = vand.u32 %v1195, 4294901760
    %1197 = vmatpush1.msra.mxu0 %v1196
    %1198 = vmatprep.subr.mxu0 0.0
    %v1199 = vand.u32 %v1018, 4294901760
    %v1200 = vsub.f32 %v1018, %v1199
    %v1201 = vand.u32 %v1200, 4294901760
    %v1202 = vsub.f32 %v1200, %v1201
    %v1203 = vand.u32 %v1202, 4294901760
    %1204 = vmatpush1.msra.mxu0 %v1203
    %1205 = vmatprep.subr.mxu0 0.0
    %v1206 = vand.u32 %v1017, 4294901760
    %v1207 = vsub.f32 %v1017, %v1206
    %v1208 = vand.u32 %v1207, 4294901760
    %v1209 = vsub.f32 %v1207, %v1208
    %v1210 = vand.u32 %v1209, 4294901760
    %1211 = vmatpush1.msra.mxu0 %v1210
    %1212 = vmatprep.subr.mxu0 0.0
    %v1213 = vand.u32 %v1016, 4294901760
    %v1214 = vsub.f32 %v1016, %v1213
    %v1215 = vand.u32 %v1214, 4294901760
    %v1216 = vsub.f32 %v1214, %v1215
    %v1217 = vand.u32 %v1216, 4294901760
    %1218 = vmatpush1.msra.mxu0 %v1217
    %1219 = vmatprep.subr.mxu0 0.0
    %v1220 = vand.u32 %v1015, 4294901760
    %v1221 = vsub.f32 %v1015, %v1220
    %v1222 = vand.u32 %v1221, 4294901760
    %v1223 = vsub.f32 %v1221, %v1222
    %v1224 = vand.u32 %v1223, 4294901760
    %1225 = vmatpush1.msra.mxu0 %v1224
    %1226 = vmatprep.subr.mxu0 0.0
    %v1227 = vand.u32 %v1014, 4294901760
    %v1228 = vsub.f32 %v1014, %v1227
    %v1229 = vand.u32 %v1228, 4294901760
    %v1230 = vsub.f32 %v1228, %v1229
    %v1231 = vand.u32 %v1230, 4294901760
    %1232 = vmatpush1.msra.mxu0 %v1231
    %1233 = vmatprep.subr.mxu0 0.0
    %1234 = vmatpush2.msra.mxu0 0.0
    %1235 = vmatprep.subr.mxu0 0.0
    %1236 = vmatpush2.msra.mxu0 0.0
    %1237 = vmatprep.subr.mxu0 0.0
    %1238 = vmatpush2.msra.mxu0 0.0
    %1239 = vmatprep.subr.mxu0 0.0
    %1240 = vmatpush2.msra.mxu0 0.0
    %1241 = vmatprep.subr.mxu0 0.0
    %1242 = vmatpush2.msra.mxu0 0.0
    %1243 = vmatprep.subr.mxu0 0.0
    %1244 = vmatpush2.msra.mxu0 0.0
    %1245 = vmatprep.subr.mxu0 0.0
    %1246 = vmatpush2.msra.mxu0 0.0
    %1247 = vmatprep.subr.mxu0 0.0
    %1248 = vmatpush2.msra.mxu0 0.0
    %1249 = vmatprep.subr.mxu0 0.0
    %1250 = vmatpush2.msra.mxu0 0.0
    %1251 = vmatprep.subr.mxu0 0.0
    %1252 = vmatpush2.msra.mxu0 0.0
    %1253 = vmatprep.subr.mxu0 0.0
    %1254 = vmatpush2.msra.mxu0 0.0
    %1255 = vmatprep.subr.mxu0 0.0
    %1256 = vmatpush2.msra.mxu0 0.0
    %1257 = vmatprep.subr.mxu0 0.0
    %1258 = vmatpush2.msra.mxu0 0.0
    %1259 = vmatprep.subr.mxu0 0.0
    %1260 = vmatpush2.msra.mxu0 0.0
    %1261 = vmatprep.subr.mxu0 0.0
    %1262 = vmatpush2.msra.mxu0 0.0
    %1263 = vmatprep.subr.mxu0 0.0
    %1264 = vmatpush2.msra.mxu0 0.0
    %1265 = vmatprep.mubr.f32.mxu0 0.0
    %v1266 = vand.u32 %v964, 4294901760
    %1267 = vmatmul.mubr.f32.gmra.mxu0 %v1266
    %v1268 = vpop.f32.mrf.mxu0
    %v1269 = vadd.f32 %v1118, %v1268
    %v1270 = vpop.f32.mrf.mxu0
    %1271 = vdwg.mxu0
    %1272 = vmatprep.subr.mxu0 0.0
    %v1273 = vand.u32 %v1029, 4294901760
    %v1274 = vsub.f32 %v1029, %v1273
    %1275 = vmatpush1.msra.mxu0 %v1274
    %1276 = vmatprep.subr.mxu0 0.0
    %v1277 = vand.u32 %v1028, 4294901760
    %v1278 = vsub.f32 %v1028, %v1277
    %1279 = vmatpush1.msra.mxu0 %v1278
    %1280 = vmatprep.subr.mxu0 0.0
    %v1281 = vand.u32 %v1027, 4294901760
    %v1282 = vsub.f32 %v1027, %v1281
    %1283 = vmatpush1.msra.mxu0 %v1282
    %1284 = vmatprep.subr.mxu0 0.0
    %v1285 = vand.u32 %v1026, 4294901760
    %v1286 = vsub.f32 %v1026, %v1285
    %1287 = vmatpush1.msra.mxu0 %v1286
    %1288 = vmatprep.subr.mxu0 0.0
    %v1289 = vand.u32 %v1025, 4294901760
    %v1290 = vsub.f32 %v1025, %v1289
    %1291 = vmatpush1.msra.mxu0 %v1290
    %1292 = vmatprep.subr.mxu0 0.0
    %v1293 = vand.u32 %v1024, 4294901760
    %v1294 = vsub.f32 %v1024, %v1293
    %1295 = vmatpush1.msra.mxu0 %v1294
    %1296 = vmatprep.subr.mxu0 0.0
    %v1297 = vand.u32 %v1023, 4294901760
    %v1298 = vsub.f32 %v1023, %v1297
    %1299 = vmatpush1.msra.mxu0 %v1298
    %1300 = vmatprep.subr.mxu0 0.0
    %v1301 = vand.u32 %v1022, 4294901760
    %v1302 = vsub.f32 %v1022, %v1301
    %1303 = vmatpush1.msra.mxu0 %v1302
    %1304 = vmatprep.subr.mxu0 0.0
    %v1305 = vand.u32 %v1021, 4294901760
    %v1306 = vsub.f32 %v1021, %v1305
    %1307 = vmatpush1.msra.mxu0 %v1306
    %1308 = vmatprep.subr.mxu0 0.0
    %v1309 = vand.u32 %v1020, 4294901760
    %v1310 = vsub.f32 %v1020, %v1309
    %1311 = vmatpush1.msra.mxu0 %v1310
    %1312 = vmatprep.subr.mxu0 0.0
    %v1313 = vand.u32 %v1019, 4294901760
    %v1314 = vsub.f32 %v1019, %v1313
    %1315 = vmatpush1.msra.mxu0 %v1314
    %1316 = vmatprep.subr.mxu0 0.0
    %v1317 = vand.u32 %v1018, 4294901760
    %v1318 = vsub.f32 %v1018, %v1317
    %1319 = vmatpush1.msra.mxu0 %v1318
    %1320 = vmatprep.subr.mxu0 0.0
    %v1321 = vand.u32 %v1017, 4294901760
    %v1322 = vsub.f32 %v1017, %v1321
    %1323 = vmatpush1.msra.mxu0 %v1322
    %1324 = vmatprep.subr.mxu0 0.0
    %v1325 = vand.u32 %v1016, 4294901760
    %v1326 = vsub.f32 %v1016, %v1325
    %1327 = vmatpush1.msra.mxu0 %v1326
    %1328 = vmatprep.subr.mxu0 0.0
    %v1329 = vand.u32 %v1015, 4294901760
    %v1330 = vsub.f32 %v1015, %v1329
    %1331 = vmatpush1.msra.mxu0 %v1330
    %1332 = vmatprep.subr.mxu0 0.0
    %v1333 = vand.u32 %v1014, 4294901760
    %v1334 = vsub.f32 %v1014, %v1333
    %1335 = vmatpush1.msra.mxu0 %v1334
    %1336 = vmatprep.subr.mxu0 0.0
    %1337 = vmatpush2.msra.mxu0 0.0
    %1338 = vmatprep.subr.mxu0 0.0
    %1339 = vmatpush2.msra.mxu0 0.0
    %1340 = vmatprep.subr.mxu0 0.0
    %1341 = vmatpush2.msra.mxu0 0.0
    %1342 = vmatprep.subr.mxu0 0.0
    %1343 = vmatpush2.msra.mxu0 0.0
    %1344 = vmatprep.subr.mxu0 0.0
    %1345 = vmatpush2.msra.mxu0 0.0
    %1346 = vmatprep.subr.mxu0 0.0
    %1347 = vmatpush2.msra.mxu0 0.0
    %1348 = vmatprep.subr.mxu0 0.0
    %1349 = vmatpush2.msra.mxu0 0.0
    %1350 = vmatprep.subr.mxu0 0.0
    %1351 = vmatpush2.msra.mxu0 0.0
    %1352 = vmatprep.subr.mxu0 0.0
    %1353 = vmatpush2.msra.mxu0 0.0
    %1354 = vmatprep.subr.mxu0 0.0
    %1355 = vmatpush2.msra.mxu0 0.0
    %1356 = vmatprep.subr.mxu0 0.0
    %1357 = vmatpush2.msra.mxu0 0.0
    %1358 = vmatprep.subr.mxu0 0.0
    %1359 = vmatpush2.msra.mxu0 0.0
    %1360 = vmatprep.subr.mxu0 0.0
    %1361 = vmatpush2.msra.mxu0 0.0
    %1362 = vmatprep.subr.mxu0 0.0
    %1363 = vmatpush2.msra.mxu0 0.0
    %1364 = vmatprep.subr.mxu0 0.0
    %1365 = vmatpush2.msra.mxu0 0.0
    %1366 = vmatprep.subr.mxu0 0.0
    %1367 = vmatpush2.msra.mxu0 0.0
    %1368 = vmatprep.mubr.f32.mxu0 0.0
    %v1369 = vand.u32 %v964, 4294901760
    %v1370 = vsub.f32 %v964, %v1369
    %1371 = vmatmul.mubr.f32.gmra.mxu0 %v1370
    %v1372 = vpop.f32.mrf.mxu0
    %v1373 = vadd.f32 %v1269, %v1372
    %v1374 = vpop.f32.mrf.mxu0
    %1375 = vdwg.mxu0
    %1376 = vmatprep.subr.mxu0 0.0
    %v1377 = vand.u32 %v1029, 4294901760
    %1378 = vmatpush1.msra.mxu0 %v1377
    %1379 = vmatprep.subr.mxu0 0.0
    %v1380 = vand.u32 %v1028, 4294901760
    %1381 = vmatpush1.msra.mxu0 %v1380
    %1382 = vmatprep.subr.mxu0 0.0
    %v1383 = vand.u32 %v1027, 4294901760
    %1384 = vmatpush1.msra.mxu0 %v1383
    %1385 = vmatprep.subr.mxu0 0.0
    %v1386 = vand.u32 %v1026, 4294901760
    %1387 = vmatpush1.msra.mxu0 %v1386
    %1388 = vmatprep.subr.mxu0 0.0
    %v1389 = vand.u32 %v1025, 4294901760
    %1390 = vmatpush1.msra.mxu0 %v1389
    %1391 = vmatprep.subr.mxu0 0.0
    %v1392 = vand.u32 %v1024, 4294901760
    %1393 = vmatpush1.msra.mxu0 %v1392
    %1394 = vmatprep.subr.mxu0 0.0
    %v1395 = vand.u32 %v1023, 4294901760
    %1396 = vmatpush1.msra.mxu0 %v1395
    %1397 = vmatprep.subr.mxu0 0.0
    %v1398 = vand.u32 %v1022, 4294901760
    %1399 = vmatpush1.msra.mxu0 %v1398
    %1400 = vmatprep.subr.mxu0 0.0
    %v1401 = vand.u32 %v1021, 4294901760
    %1402 = vmatpush1.msra.mxu0 %v1401
    %1403 = vmatprep.subr.mxu0 0.0
    %v1404 = vand.u32 %v1020, 4294901760
    %1405 = vmatpush1.msra.mxu0 %v1404
    %1406 = vmatprep.subr.mxu0 0.0
    %v1407 = vand.u32 %v1019, 4294901760
    %1408 = vmatpush1.msra.mxu0 %v1407
    %1409 = vmatprep.subr.mxu0 0.0
    %v1410 = vand.u32 %v1018, 4294901760
    %1411 = vmatpush1.msra.mxu0 %v1410
    %1412 = vmatprep.subr.mxu0 0.0
    %v1413 = vand.u32 %v1017, 4294901760
    %1414 = vmatpush1.msra.mxu0 %v1413
    %1415 = vmatprep.subr.mxu0 0.0
    %v1416 = vand.u32 %v1016, 4294901760
    %1417 = vmatpush1.msra.mxu0 %v1416
    %1418 = vmatprep.subr.mxu0 0.0
    %v1419 = vand.u32 %v1015, 4294901760
    %1420 = vmatpush1.msra.mxu0 %v1419
    %1421 = vmatprep.subr.mxu0 0.0
    %v1422 = vand.u32 %v1014, 4294901760
    %1423 = vmatpush1.msra.mxu0 %v1422
    %1424 = vmatprep.subr.mxu0 0.0
    %1425 = vmatpush2.msra.mxu0 0.0
    %1426 = vmatprep.subr.mxu0 0.0
    %1427 = vmatpush2.msra.mxu0 0.0
    %1428 = vmatprep.subr.mxu0 0.0
    %1429 = vmatpush2.msra.mxu0 0.0
    %1430 = vmatprep.subr.mxu0 0.0
    %1431 = vmatpush2.msra.mxu0 0.0
    %1432 = vmatprep.subr.mxu0 0.0
    %1433 = vmatpush2.msra.mxu0 0.0
    %1434 = vmatprep.subr.mxu0 0.0
    %1435 = vmatpush2.msra.mxu0 0.0
    %1436 = vmatprep.subr.mxu0 0.0
    %1437 = vmatpush2.msra.mxu0 0.0
    %1438 = vmatprep.subr.mxu0 0.0
    %1439 = vmatpush2.msra.mxu0 0.0
    %1440 = vmatprep.subr.mxu0 0.0
    %1441 = vmatpush2.msra.mxu0 0.0
    %1442 = vmatprep.subr.mxu0 0.0
    %1443 = vmatpush2.msra.mxu0 0.0
    %1444 = vmatprep.subr.mxu0 0.0
    %1445 = vmatpush2.msra.mxu0 0.0
    %1446 = vmatprep.subr.mxu0 0.0
    %1447 = vmatpush2.msra.mxu0 0.0
    %1448 = vmatprep.subr.mxu0 0.0
    %1449 = vmatpush2.msra.mxu0 0.0
    %1450 = vmatprep.subr.mxu0 0.0
    %1451 = vmatpush2.msra.mxu0 0.0
    %1452 = vmatprep.subr.mxu0 0.0
    %1453 = vmatpush2.msra.mxu0 0.0
    %1454 = vmatprep.subr.mxu0 0.0
    %1455 = vmatpush2.msra.mxu0 0.0
    %1456 = vmatprep.mubr.f32.mxu0 0.0
    %v1457 = vand.u32 %v964, 4294901760
    %v1458 = vsub.f32 %v964, %v1457
    %v1459 = vand.u32 %v1458, 4294901760
    %1460 = vmatmul.mubr.f32.gmra.mxu0 %v1459
    %v1461 = vpop.f32.mrf.mxu0
    %v1462 = vadd.f32 %v1373, %v1461
    %v1463 = vpop.f32.mrf.mxu0
    %1464 = vdwg.mxu0
    %1465 = vmatprep.subr.mxu0 0.0
    %v1466 = vand.u32 %v1029, 4294901760
    %v1467 = vsub.f32 %v1029, %v1466
    %v1468 = vand.u32 %v1467, 4294901760
    %1469 = vmatpush1.msra.mxu0 %v1468
    %1470 = vmatprep.subr.mxu0 0.0
    %v1471 = vand.u32 %v1028, 4294901760
    %v1472 = vsub.f32 %v1028, %v1471
    %v1473 = vand.u32 %v1472, 4294901760
    %1474 = vmatpush1.msra.mxu0 %v1473
    %1475 = vmatprep.subr.mxu0 0.0
    %v1476 = vand.u32 %v1027, 4294901760
    %v1477 = vsub.f32 %v1027, %v1476
    %v1478 = vand.u32 %v1477, 4294901760
    %1479 = vmatpush1.msra.mxu0 %v1478
    %1480 = vmatprep.subr.mxu0 0.0
    %v1481 = vand.u32 %v1026, 4294901760
    %v1482 = vsub.f32 %v1026, %v1481
    %v1483 = vand.u32 %v1482, 4294901760
    %1484 = vmatpush1.msra.mxu0 %v1483
    %1485 = vmatprep.subr.mxu0 0.0
    %v1486 = vand.u32 %v1025, 4294901760
    %v1487 = vsub.f32 %v1025, %v1486
    %v1488 = vand.u32 %v1487, 4294901760
    %1489 = vmatpush1.msra.mxu0 %v1488
    %1490 = vmatprep.subr.mxu0 0.0
    %v1491 = vand.u32 %v1024, 4294901760
    %v1492 = vsub.f32 %v1024, %v1491
    %v1493 = vand.u32 %v1492, 4294901760
    %1494 = vmatpush1.msra.mxu0 %v1493
    %1495 = vmatprep.subr.mxu0 0.0
    %v1496 = vand.u32 %v1023, 4294901760
    %v1497 = vsub.f32 %v1023, %v1496
    %v1498 = vand.u32 %v1497, 4294901760
    %1499 = vmatpush1.msra.mxu0 %v1498
    %1500 = vmatprep.subr.mxu0 0.0
    %v1501 = vand.u32 %v1022, 4294901760
    %v1502 = vsub.f32 %v1022, %v1501
    %v1503 = vand.u32 %v1502, 4294901760
    %1504 = vmatpush1.msra.mxu0 %v1503
    %1505 = vmatprep.subr.mxu0 0.0
    %v1506 = vand.u32 %v1021, 4294901760
    %v1507 = vsub.f32 %v1021, %v1506
    %v1508 = vand.u32 %v1507, 4294901760
    %1509 = vmatpush1.msra.mxu0 %v1508
    %1510 = vmatprep.subr.mxu0 0.0
    %v1511 = vand.u32 %v1020, 4294901760
    %v1512 = vsub.f32 %v1020, %v1511
    %v1513 = vand.u32 %v1512, 4294901760
    %1514 = vmatpush1.msra.mxu0 %v1513
    %1515 = vmatprep.subr.mxu0 0.0
    %v1516 = vand.u32 %v1019, 4294901760
    %v1517 = vsub.f32 %v1019, %v1516
    %v1518 = vand.u32 %v1517, 4294901760
    %1519 = vmatpush1.msra.mxu0 %v1518
    %1520 = vmatprep.subr.mxu0 0.0
    %v1521 = vand.u32 %v1018, 4294901760
    %v1522 = vsub.f32 %v1018, %v1521
    %v1523 = vand.u32 %v1522, 4294901760
    %1524 = vmatpush1.msra.mxu0 %v1523
    %1525 = vmatprep.subr.mxu0 0.0
    %v1526 = vand.u32 %v1017, 4294901760
    %v1527 = vsub.f32 %v1017, %v1526
    %v1528 = vand.u32 %v1527, 4294901760
    %1529 = vmatpush1.msra.mxu0 %v1528
    %1530 = vmatprep.subr.mxu0 0.0
    %v1531 = vand.u32 %v1016, 4294901760
    %v1532 = vsub.f32 %v1016, %v1531
    %v1533 = vand.u32 %v1532, 4294901760
    %1534 = vmatpush1.msra.mxu0 %v1533
    %1535 = vmatprep.subr.mxu0 0.0
    %v1536 = vand.u32 %v1015, 4294901760
    %v1537 = vsub.f32 %v1015, %v1536
    %v1538 = vand.u32 %v1537, 4294901760
    %1539 = vmatpush1.msra.mxu0 %v1538
    %1540 = vmatprep.subr.mxu0 0.0
    %v1541 = vand.u32 %v1014, 4294901760
    %v1542 = vsub.f32 %v1014, %v1541
    %v1543 = vand.u32 %v1542, 4294901760
    %1544 = vmatpush1.msra.mxu0 %v1543
    %1545 = vmatprep.subr.mxu0 0.0
    %1546 = vmatpush2.msra.mxu0 0.0
    %1547 = vmatprep.subr.mxu0 0.0
    %1548 = vmatpush2.msra.mxu0 0.0
    %1549 = vmatprep.subr.mxu0 0.0
    %1550 = vmatpush2.msra.mxu0 0.0
    %1551 = vmatprep.subr.mxu0 0.0
    %1552 = vmatpush2.msra.mxu0 0.0
    %1553 = vmatprep.subr.mxu0 0.0
    %1554 = vmatpush2.msra.mxu0 0.0
    %1555 = vmatprep.subr.mxu0 0.0
    %1556 = vmatpush2.msra.mxu0 0.0
    %1557 = vmatprep.subr.mxu0 0.0
    %1558 = vmatpush2.msra.mxu0 0.0
    %1559 = vmatprep.subr.mxu0 0.0
    %1560 = vmatpush2.msra.mxu0 0.0
    %1561 = vmatprep.subr.mxu0 0.0
    %1562 = vmatpush2.msra.mxu0 0.0
    %1563 = vmatprep.subr.mxu0 0.0
    %1564 = vmatpush2.msra.mxu0 0.0
    %1565 = vmatprep.subr.mxu0 0.0
    %1566 = vmatpush2.msra.mxu0 0.0
    %1567 = vmatprep.subr.mxu0 0.0
    %1568 = vmatpush2.msra.mxu0 0.0
    %1569 = vmatprep.subr.mxu0 0.0
    %1570 = vmatpush2.msra.mxu0 0.0
    %1571 = vmatprep.subr.mxu0 0.0
    %1572 = vmatpush2.msra.mxu0 0.0
    %1573 = vmatprep.subr.mxu0 0.0
    %1574 = vmatpush2.msra.mxu0 0.0
    %1575 = vmatprep.subr.mxu0 0.0
    %1576 = vmatpush2.msra.mxu0 0.0
    %1577 = vmatprep.mubr.f32.mxu0 0.0
    %v1578 = vand.u32 %v964, 4294901760
    %1579 = vmatmul.mubr.f32.gmra.mxu0 %v1578
    %v1580 = vpop.f32.mrf.mxu0
    %v1581 = vadd.f32 %v1462, %v1580
    %v1582 = vpop.f32.mrf.mxu0
    %1583 = vdwg.mxu0
    %1584 = vmatprep.subr.mxu0 0.0
    %v1585 = vand.u32 %v1029, 4294901760
    %1586 = vmatpush1.msra.mxu0 %v1585
    %1587 = vmatprep.subr.mxu0 0.0
    %v1588 = vand.u32 %v1028, 4294901760
    %1589 = vmatpush1.msra.mxu0 %v1588
    %1590 = vmatprep.subr.mxu0 0.0
    %v1591 = vand.u32 %v1027, 4294901760
    %1592 = vmatpush1.msra.mxu0 %v1591
    %1593 = vmatprep.subr.mxu0 0.0
    %v1594 = vand.u32 %v1026, 4294901760
    %1595 = vmatpush1.msra.mxu0 %v1594
    %1596 = vmatprep.subr.mxu0 0.0
    %v1597 = vand.u32 %v1025, 4294901760
    %1598 = vmatpush1.msra.mxu0 %v1597
    %1599 = vmatprep.subr.mxu0 0.0
    %v1600 = vand.u32 %v1024, 4294901760
    %1601 = vmatpush1.msra.mxu0 %v1600
    %1602 = vmatprep.subr.mxu0 0.0
    %v1603 = vand.u32 %v1023, 4294901760
    %1604 = vmatpush1.msra.mxu0 %v1603
    %1605 = vmatprep.subr.mxu0 0.0
    %v1606 = vand.u32 %v1022, 4294901760
    %1607 = vmatpush1.msra.mxu0 %v1606
    %1608 = vmatprep.subr.mxu0 0.0
    %v1609 = vand.u32 %v1021, 4294901760
    %1610 = vmatpush1.msra.mxu0 %v1609
    %1611 = vmatprep.subr.mxu0 0.0
    %v1612 = vand.u32 %v1020, 4294901760
    %1613 = vmatpush1.msra.mxu0 %v1612
    %1614 = vmatprep.subr.mxu0 0.0
    %v1615 = vand.u32 %v1019, 4294901760
    %1616 = vmatpush1.msra.mxu0 %v1615
    %1617 = vmatprep.subr.mxu0 0.0
    %v1618 = vand.u32 %v1018, 4294901760
    %1619 = vmatpush1.msra.mxu0 %v1618
    %1620 = vmatprep.subr.mxu0 0.0
    %v1621 = vand.u32 %v1017, 4294901760
    %1622 = vmatpush1.msra.mxu0 %v1621
    %1623 = vmatprep.subr.mxu0 0.0
    %v1624 = vand.u32 %v1016, 4294901760
    %1625 = vmatpush1.msra.mxu0 %v1624
    %1626 = vmatprep.subr.mxu0 0.0
    %v1627 = vand.u32 %v1015, 4294901760
    %1628 = vmatpush1.msra.mxu0 %v1627
    %1629 = vmatprep.subr.mxu0 0.0
    %v1630 = vand.u32 %v1014, 4294901760
    %1631 = vmatpush1.msra.mxu0 %v1630
    %1632 = vmatprep.subr.mxu0 0.0
    %1633 = vmatpush2.msra.mxu0 0.0
    %1634 = vmatprep.subr.mxu0 0.0
    %1635 = vmatpush2.msra.mxu0 0.0
    %1636 = vmatprep.subr.mxu0 0.0
    %1637 = vmatpush2.msra.mxu0 0.0
    %1638 = vmatprep.subr.mxu0 0.0
    %1639 = vmatpush2.msra.mxu0 0.0
    %1640 = vmatprep.subr.mxu0 0.0
    %1641 = vmatpush2.msra.mxu0 0.0
    %1642 = vmatprep.subr.mxu0 0.0
    %1643 = vmatpush2.msra.mxu0 0.0
    %1644 = vmatprep.subr.mxu0 0.0
    %1645 = vmatpush2.msra.mxu0 0.0
    %1646 = vmatprep.subr.mxu0 0.0
    %1647 = vmatpush2.msra.mxu0 0.0
    %1648 = vmatprep.subr.mxu0 0.0
    %1649 = vmatpush2.msra.mxu0 0.0
    %1650 = vmatprep.subr.mxu0 0.0
    %1651 = vmatpush2.msra.mxu0 0.0
    %1652 = vmatprep.subr.mxu0 0.0
    %1653 = vmatpush2.msra.mxu0 0.0
    %1654 = vmatprep.subr.mxu0 0.0
    %1655 = vmatpush2.msra.mxu0 0.0
    %1656 = vmatprep.subr.mxu0 0.0
    %1657 = vmatpush2.msra.mxu0 0.0
    %1658 = vmatprep.subr.mxu0 0.0
    %1659 = vmatpush2.msra.mxu0 0.0
    %1660 = vmatprep.subr.mxu0 0.0
    %1661 = vmatpush2.msra.mxu0 0.0
    %1662 = vmatprep.subr.mxu0 0.0
    %1663 = vmatpush2.msra.mxu0 0.0
    %1664 = vmatprep.mubr.f32.mxu0 0.0
    %v1665 = vand.u32 %v964, 4294901760
    %1666 = vmatmul.mubr.f32.gmra.mxu0 %v1665
    %v1667 = vpop.f32.mrf.mxu0
    %v1668 = vadd.f32 %v1581, %v1667
    %v1669 = vpop.f32.mrf.mxu0
    %1670 = vdwg.mxu0
    %1671 = vmax.xlane.f32.xlu0 %v1668
    %v1672 = vpop.xlane.xlu0 %1671
    %v1673 = vld [vmem:[%s3] sm:$0xff]
    %v1674 = vmul.f32 %v1673, %v1672
    %1676 = vset.pattern.permute.xlu0 0
    %1677 = vperm.xlu0 %1676, %v1674
    %v1678 = vpop.permute.xlu0 %1677
    %vm1680 = vcmp.lt.f32.partialorder %v1668, %v1678
    %vm1681 = vmand %vm951, %vm1680
    %v1682 = vsel %vm1681, 1.0, 0.0
    %1683 = vadd.xlane.f32.xlu0 %v1682
    %v1684 = vpop.xlane.xlu0 %1683
    %v1685 = vmin.f32 %v1684, 5.0
    %vm1686 = vcmp.eq.s32.totalorder %v948, 0
    %v1687 = vsel %vm1686, %v1685, %v944
    %1688 = vst [vmem:[#allocation7] sm:$0xff] %v1687
    // Predicated region
    $region26: #{tpu_custom_call.1} parent=1 // pred_check
      _
    $region27: #{tpu_custom_call.1} parent=1 // pred_check_branch
      %1690 = sbr.rel (0) target = $region29
    $region28: #{tpu_custom_call.1} parent=1 // pred_region
      %s1692 = ssub.s32 128, 128
      %1693 = vsyncadd [#allocation4], %s1692
      %s1695 = sshll.u32 [#allocation7], 4
      %s1696 = int_to_ptr.vmem [resolvable:$true] %s1695
      %1698 = dma.vmem_to_hbm [thread:$0]  %s1696, 128, %s4, [#allocation4]
    $region29: #{tpu_custom_call.1} parent=1 // pred_fallthru
      _
    // Predicated region
    $region30: #{tpu_custom_call.1} parent=1 // pred_check
      _
    $region31: #{tpu_custom_call.1} parent=1 // pred_check_branch
      %1700 = sbr.rel (0) target = $region33
    $region32: #{tpu_custom_call.1} parent=1 // pred_region
      %1701 = dma.done [#allocation4], 128
    $region33: #{tpu_custom_call.1} parent=1 // pred_fallthru
      _
    %1702 = vsyncpa [#allocation3], 1
    %1703 = vsyncpa [#allocation6], 1
    %1704 = vsyncpa [#allocation4], 1

</llo_original>
